<compile_context>
chip_gen: v7x
topology: tpu7x:2x2x1
jax: 0.10.0
libtpu: 0.0.40
codegen_flags: <defaults>
</compile_context>

<pallas_src>
import numpy as np

import jax
import jax.numpy as jnp
from jax import lax
from jax.experimental import pallas as pl
from jax.experimental.pallas import tpu as pltpu

LEAKY_SLOPE = 0.01      # kept for the numpy reference (no-op after ReLU)
BN_EPS = 1e-5
FINALDEPTH = 3          # -> 4 Linear layers per branch (module default)
NUM_GEO = 13


# --------------------------------------------------------------------------- #
# Pallas kernel (all 4 branches fused on the lane axis, width 4H)
# --------------------------------------------------------------------------- #
def spnn_kernel(x_ref,      # (E, Dpad)     f32  concatenated [n_i,n_j,n_k,geo], zero-padded
                mask_ref,   # (E, 4H)       f32  0/1 branch mask, repeated H lanes per branch
                matt_ref,   # (E, 4H)       f32  mask * att[branch]  (final accumulate weight)
                ii_ref,     # (1, E)        i32  destination node index per triplet (lane-dense)
                w0_ref,     # (Dpad, 4H)    f32  layer-0 weights, pre-transposed + branch-stacked
                wh_ref,     # (3, 4H, 4H)   f32  layers 1..3, block-diagonal per branch
                b_ref,      # (4, 1, 4H)    f32  biases per layer
                g_ref,      # (4, 1, 4H)    f32  BN gamma per layer
                bt_ref,     # (4, 1, 4H)    f32  BN beta per layer
                fold_ref,   # (4H, H)       f32  4 stacked identities (sum branch blocks)
                out_ref):   # (Npad, H)     f32  scatter_add over node index i
    E = x_ref.shape[0]
    Npad = out_ref.shape[0]

    mask = mask_ref[...]                                       # (E, 4H) 0/1
    # per-branch (per-lane) masked row count, computed once and reused by all layers
    inv_c = 1.0 / jnp.maximum(jnp.sum(mask, axis=0, keepdims=True), 1.0)   # (1, 4H)

    h = x_ref[...]                                             # (E, Dpad)
    for l in range(FINALDEPTH + 1):                            # static unroll, 4 layers
        W = w0_ref[...] if l == 0 else wh_ref[l - 1]           # (Dpad,4H) / (4H,4H)
        z = jnp.dot(h, W, preferred_element_type=jnp.float32) + b_ref[l]   # (E, 4H)

        # BatchNorm1d (training mode) over the masked rows only — one-pass stats.
        zm = z * mask
        s1 = jnp.sum(zm, axis=0, keepdims=True)                # (1, 4H)
        s2 = jnp.sum(zm * z, axis=0, keepdims=True)            # (1, 4H)
        mean = s1 * inv_c
        var = jnp.maximum(s2 * inv_c - mean * mean, 0.0)       # clamp f32 cancellation
        scale = g_ref[l] * lax.rsqrt(var + BN_EPS)             # (1, 4H)
        shift = bt_ref[l] - mean * scale
        # fused normalize + affine + ReLU
        h = jnp.maximum(z * scale + shift, 0.0)                # (E, 4H)

    # leaky_relu after ReLU is the identity -> dropped. Attention scale and the
    # branch mask are folded into one precomputed multiplier.
    masked = h * matt_ref[...]                                 # (E, 4H)

    # scatter_add(x_output, i, dim=0, dim_size=num_nodes):
    # transposed one-hot (Npad, E) -> layout-natural matmul, then fold the four
    # branch lane-blocks down to H with a (4H, H) stacked-identity matmul.
    ii = ii_ref[...]                                           # (1, E) i32
    onehot = (lax.broadcasted_iota(jnp.int32, (Npad, E), 0) == ii).astype(jnp.float32)
    out4h = jnp.dot(onehot, masked, preferred_element_type=jnp.float32)    # (Npad, 4H)
    out_ref[...] = jnp.dot(out4h, fold_ref[...], preferred_element_type=jnp.float32)


# --------------------------------------------------------------------------- #
# Wrapper: gather/concat, lane-dense mask construction, weight packing, padding
# --------------------------------------------------------------------------- #
def spnn_forward(node_feature, geo_encoding, edge_index_2rd, edx_jk, edx_ij,
                 num_edge_inside, att, num_nodes, params):
    i_idx, j_idx, k_idx = edge_index_2rd
    x_cat = jnp.concatenate([node_feature[i_idx], node_feature[j_idx],
                             node_feature[k_idx], geo_encoding], axis=-1)   # (E, 3H+13)
    E, D_in = x_cat.shape
    H = params["W0"].shape[1]
    L = FINALDEPTH + 1
    D_pad = 128 * pl.cdiv(D_in, 128)
    E_pad = 8 * pl.cdiv(E, 8)
    N_pad = 8 * pl.cdiv(num_nodes, 8)

    # ---- lane-dense branch masks (precomputed in the wrapper) -------------- #
    in1_ij = edx_ij < num_edge_inside
    in1_jk = edx_jk < num_edge_inside
    m = jnp.stack([in1_ij & in1_jk,
                   in1_ij & ~in1_jk,
                   ~in1_ij & in1_jk,
                   ~in1_ij & ~in1_jk], axis=1).astype(jnp.float32)          # (E, 4)
    mask4h = jnp.repeat(m, H, axis=1)                                       # (E, 4H)
    att_rep = jnp.repeat(att.astype(jnp.float32), H)                        # (4H,)
    matt4h = mask4h * att_rep[None, :]

    # ---- pack weights: pre-transposed (K, N), branches fused on lanes ------ #
    W0 = params["W0"]                                                       # (4, H, D_in)
    W0_packed = jnp.concatenate([W0[idx].T for idx in range(4)], axis=1)    # (D_in, 4H)
    W0_packed = jnp.pad(W0_packed, ((0, D_pad - D_in), (0, 0)))             # (D_pad, 4H)

    Wh_packed = jnp.zeros((FINALDEPTH, 4 * H, 4 * H), jnp.float32)          # block-diag
    for l in range(1, L):
        for idx in range(4):
            Wh_packed = Wh_packed.at[l - 1, idx * H:(idx + 1) * H,
                                     idx * H:(idx + 1) * H].set(
                params["Wr"][idx * FINALDEPTH + (l - 1)].T)

    def pack_per_layer(arr0, arrr):
        rows = []
        for l in range(L):
            if l == 0:
                rows.append(jnp.concatenate([arr0[idx] for idx in range(4)], axis=-1))
            else:
                rows.append(jnp.concatenate([arrr[idx * FINALDEPTH + (l - 1)]
                                             for idx in range(4)], axis=-1))
        return jnp.stack(rows)                                              # (4, 1, 4H)

    b_packed = pack_per_layer(params["b0"], params["br"])
    g_packed = jnp.stack([jnp.concatenate([params["gamma"][idx * L + l] for idx in range(4)],
                                          axis=-1) for l in range(L)])      # (4, 1, 4H)
    bt_packed = jnp.stack([jnp.concatenate([params["beta"][idx * L + l] for idx in range(4)],
                                           axis=-1) for l in range(L)])     # (4, 1, 4H)
    fold = jnp.concatenate([jnp.eye(H, dtype=jnp.float32)] * 4, axis=0)     # (4H, H)

    # ---- pad E / N and the index row --------------------------------------- #
    pad_e = E_pad - E
    x_pad = jnp.pad(x_cat, ((0, pad_e), (0, D_pad - D_in)))
    mask4h = jnp.pad(mask4h, ((0, pad_e), (0, 0)))
    matt4h = jnp.pad(matt4h, ((0, pad_e), (0, 0)))
    ii_row = jnp.pad(i_idx.astype(jnp.int32), (0, pad_e)).reshape(1, E_pad)

    # ---- cost estimate + compiler params ------------------------------------ #
    flops = (2 * E_pad * (D_pad * 4 * H + FINALDEPTH * (4 * H) ** 2)
             + 2 * N_pad * E_pad * 4 * H + 2 * N_pad * 4 * H * H)
    bytes_accessed = 4 * (E_pad * D_pad + 2 * E_pad * 4 * H + E_pad
                          + D_pad * 4 * H + FINALDEPTH * (4 * H) ** 2
                          + 3 * L * 4 * H + 4 * H * H + N_pad * H)
    ce = pl.CostEstimate(flops=flops, transcendentals=0, bytes_accessed=bytes_accessed)

    vmem = pl.BlockSpec(memory_space=pltpu.MemorySpace.VMEM)

    # TODO(synk): for production sizes (large E / num_nodes) this monolithic,
    # un-gridded layout must become an E-tiled pipelined grid with two-pass BN
    # statistics, and the one-hot scatter should move to a segment_sum outside
    # the kernel; kept single-block here because BN needs global batch stats.
    out = pl.pallas_call(
        spnn_kernel,
        out_shape=jax.ShapeDtypeStruct((N_pad, H), jnp.float32),
        in_specs=[vmem] * 10,
        out_specs=vmem,
        compiler_params=pltpu.CompilerParams(vmem_limit_bytes=64 * 1024 * 1024),
        cost_estimate=ce,
    )(x_pad, mask4h, matt4h, ii_row,
      W0_packed, Wh_packed, b_packed, g_packed, bt_packed, fold)

    return out[:num_nodes]


# --------------------------------------------------------------------------- #
# Deterministic parameter init (Xavier uniform weights, zero bias, BN id init)
# --------------------------------------------------------------------------- #
def init_params(key, hidden, num_geo):
    d_in = 3 * hidden + num_geo
    keys = jax.random.split(key, 4 * (FINALDEPTH + 1))
    W0, Wr = [], []
    ki = 0
    for _ in range(4):
        bound0 = np.sqrt(6.0 / (d_in + hidden))
        W0.append(jax.random.uniform(keys[ki], (hidden, d_in), jnp.float32,
                                     -bound0, bound0))
        ki += 1
        for _ in range(FINALDEPTH):
            bound = np.sqrt(6.0 / (hidden + hidden))
            Wr.append(jax.random.uniform(keys[ki], (hidden, hidden), jnp.float32,
                                         -bound, bound))
            ki += 1
    return {
        "W0": jnp.stack(W0),                                         # (4, H, 3H+13)
        "b0": jnp.zeros((4, 1, hidden), jnp.float32),
        "Wr": jnp.stack(Wr),                                         # (12, H, H)
        "br": jnp.zeros((4 * FINALDEPTH, 1, hidden), jnp.float32),
        "gamma": jnp.ones((4 * (FINALDEPTH + 1), 1, hidden), jnp.float32),
        "beta": jnp.zeros((4 * (FINALDEPTH + 1), 1, hidden), jnp.float32),
    }


# --------------------------------------------------------------------------- #
# NumPy reference replicating the PyTorch forward (training-mode BatchNorm1d)
# --------------------------------------------------------------------------- #
def reference_numpy(node_feature, geo, i, j, k, edx_jk, edx_ij, nei, att,
                    params, num_nodes):
    nf = np.asarray(node_feature); geo = np.asarray(geo)
    i = np.asarray(i); j = np.asarray(j); k = np.asarray(k)
    edx_ij = np.asarray(edx_ij); edx_jk = np.asarray(edx_jk)
    att = np.asarray(att)
    W0 = np.asarray(params["W0"]); Wr = np.asarray(params["Wr"])
    b0 = np.asarray(params["b0"]); br = np.asarray(params["br"])
    gm = np.asarray(params["gamma"]); bt = np.asarray(params["beta"])

    x_cat = np.concatenate([nf[i], nf[j], nf[k], geo], axis=-1)
    E = x_cat.shape[0]
    H = W0.shape[1]
    masks = [(edx_ij < nei) & (edx_jk < nei),
             (edx_ij < nei) & (edx_jk >= nei),
             (edx_ij >= nei) & (edx_jk < nei),
             (edx_ij >= nei) & (edx_jk >= nei)]
    x_output = np.zeros((E, H), np.float32)
    for idx in range(4):
        m = masks[idx]
        x = x_cat[m]
        for l in range(FINALDEPTH + 1):
            if l == 0:
                W, b = W0[idx], b0[idx, 0]
            else:
                W, b = Wr[idx * FINALDEPTH + (l - 1)], br[idx * FINALDEPTH + (l - 1), 0]
            z = x @ W.T + b
            mean = z.mean(axis=0)
            var = z.var(axis=0)                      # biased, as used by BN normalization
            z = (z - mean) / np.sqrt(var + BN_EPS)
            z = z * gm[idx * (FINALDEPTH + 1) + l, 0] + bt[idx * (FINALDEPTH + 1) + l, 0]
            x = np.maximum(z, 0.0)
        x = np.where(x >= 0.0, x, LEAKY_SLOPE * x) * att[idx]
        x_output[m] += x
    out = np.zeros((num_nodes, H), np.float32)
    np.add.at(out, i, x_output)
    return out


# --------------------------------------------------------------------------- #
if __name__ == "__main__":
    H = 32            # hidden_channels
    N_NODES = 8
    E = 64            # number of 2nd-order triplets
    NUM_EDGES = 20
    NUM_EDGE_INSIDE = 10

    key = jax.random.PRNGKey(0)
    k_nf, k_geo, k_i, k_j, k_k, k_eij, k_ejk, k_att, k_w = jax.random.split(key, 9)

    node_feature = jax.random.normal(k_nf, (N_NODES, H), jnp.float32)
    geo_encoding = jax.random.normal(k_geo, (E, NUM_GEO), jnp.float32)
    i_idx = jax.random.randint(k_i, (E,), 0, N_NODES, jnp.int32)
    j_idx = jax.random.randint(k_j, (E,), 0, N_NODES, jnp.int32)
    k_idx = jax.random.randint(k_k, (E,), 0, N_NODES, jnp.int32)
    edx_ij = jax.random.randint(k_eij, (E,), 0, NUM_EDGES, jnp.int32)
    edx_jk = jax.random.randint(k_ejk, (E,), 0, NUM_EDGES, jnp.int32)
    # guarantee every edge-type branch is non-empty (BatchNorm needs >=1 row)
    edx_ij = edx_ij.at[:4].set(jnp.array([0, 0, 15, 15], jnp.int32))
    edx_jk = edx_jk.at[:4].set(jnp.array([0, 15, 0, 15], jnp.int32))
    att = jax.random.uniform(k_att, (4,), jnp.float32, 0.1, 1.0)

    params = init_params(k_w, H, NUM_GEO)

    out = spnn_forward(node_feature, geo_encoding, (i_idx, j_idx, k_idx),
                       edx_jk, edx_ij, NUM_EDGE_INSIDE, att, N_NODES, params)
    out = jax.block_until_ready(out)

    ref = reference_numpy(node_feature, geo_encoding, i_idx, j_idx, k_idx,
                          edx_jk, edx_ij, NUM_EDGE_INSIDE, att, params, N_NODES)
    np.testing.assert_allclose(np.asarray(out), ref, rtol=3e-4, atol=3e-4)
    print("KERNEL_OK")
</pallas_src>

<mosaic_0001>
module attributes {stable_mosaic.version = 11 : i64} {
  func.func @spnn_kernel(%arg0: memref<64x128xf32, #tpu.memory_space<vmem>>, %arg1: memref<64x128xf32, #tpu.memory_space<vmem>>, %arg2: memref<64x128xf32, #tpu.memory_space<vmem>>, %arg3: memref<1x64xi32, #tpu.memory_space<vmem>>, %arg4: memref<128x128xf32, #tpu.memory_space<vmem>>, %arg5: memref<3x128x128xf32, #tpu.memory_space<vmem>>, %arg6: memref<4x1x128xf32, #tpu.memory_space<vmem>>, %arg7: memref<4x1x128xf32, #tpu.memory_space<vmem>>, %arg8: memref<4x1x128xf32, #tpu.memory_space<vmem>>, %arg9: memref<128x32xf32, #tpu.memory_space<vmem>>, %arg10: memref<8x32xf32, #tpu.memory_space<vmem>>) attributes {dimension_semantics = [], scalar_prefetch = 0 : i64, scratch_operands = 0 : i64, tpu.core_type = #tpu.core_type<tc>} {
    %c0 = arith.constant 0 : index
    %c0_0 = arith.constant 0 : index
    %0 = vector.load %arg1[%c0, %c0_0] : memref<64x128xf32, #tpu.memory_space<vmem>>, vector<64x128xf32>
    %cst = arith.constant dense<0.000000e+00> : vector<128xf32>
    %1 = vector.multi_reduction <add>, %0, %cst [0] : vector<64x128xf32> to vector<128xf32>
    %2 = vector.shape_cast %1 : vector<128xf32> to vector<1x128xf32>
    %cst_1 = arith.constant 1.000000e+00 : f32
    %3 = vector.broadcast %cst_1 : f32 to vector<1x128xf32>
    %4 = arith.maximumf %2, %3 : vector<1x128xf32>
    %cst_2 = arith.constant 1.000000e+00 : f32
    %5 = vector.broadcast %cst_2 : f32 to vector<1x128xf32>
    %6 = arith.divf %5, %4 : vector<1x128xf32>
    %c0_3 = arith.constant 0 : index
    %c0_4 = arith.constant 0 : index
    %7 = vector.load %arg0[%c0_3, %c0_4] : memref<64x128xf32, #tpu.memory_space<vmem>>, vector<64x128xf32>
    %c0_5 = arith.constant 0 : index
    %c0_6 = arith.constant 0 : index
    %8 = vector.load %arg4[%c0_5, %c0_6] : memref<128x128xf32, #tpu.memory_space<vmem>>, vector<128x128xf32>
    %cst_7 = arith.constant dense<0.000000e+00> : vector<64x128xf32>
    %9 = tpu.matmul %7, %8, %cst_7 {dimension_numbers = #tpu.dot_dimension_numbers<[1], [0], [0], [1], [0, 0, 1, 1], [], []>} : vector<64x128xf32>, vector<128x128xf32>, vector<64x128xf32> -> vector<64x128xf32>
    %c0_8 = arith.constant 0 : index
    %c0_9 = arith.constant 0 : index
    %c0_10 = arith.constant 0 : index
    %10 = vector.load %arg6[%c0_8, %c0_9, %c0_10] : memref<4x1x128xf32, #tpu.memory_space<vmem>>, vector<1x1x128xf32>
    %11 = vector.shape_cast %10 : vector<1x1x128xf32> to vector<1x128xf32>
    %12 = vector.broadcast %11 : vector<1x128xf32> to vector<64x128xf32>
    %13 = arith.addf %9, %12 : vector<64x128xf32>
    %14 = arith.mulf %13, %0 : vector<64x128xf32>
    %cst_11 = arith.constant dense<0.000000e+00> : vector<128xf32>
    %15 = vector.multi_reduction <add>, %14, %cst_11 [0] : vector<64x128xf32> to vector<128xf32>
    %16 = vector.shape_cast %15 : vector<128xf32> to vector<1x128xf32>
    %17 = arith.mulf %14, %13 : vector<64x128xf32>
    %cst_12 = arith.constant dense<0.000000e+00> : vector<128xf32>
    %18 = vector.multi_reduction <add>, %17, %cst_12 [0] : vector<64x128xf32> to vector<128xf32>
    %19 = vector.shape_cast %18 : vector<128xf32> to vector<1x128xf32>
    %20 = arith.mulf %16, %6 : vector<1x128xf32>
    %21 = arith.mulf %19, %6 : vector<1x128xf32>
    %22 = arith.mulf %20, %20 : vector<1x128xf32>
    %23 = arith.subf %21, %22 : vector<1x128xf32>
    %cst_13 = arith.constant 0.000000e+00 : f32
    %24 = vector.broadcast %cst_13 : f32 to vector<1x128xf32>
    %25 = arith.maximumf %23, %24 : vector<1x128xf32>
    %c0_14 = arith.constant 0 : index
    %c0_15 = arith.constant 0 : index
    %c0_16 = arith.constant 0 : index
    %26 = vector.load %arg7[%c0_14, %c0_15, %c0_16] : memref<4x1x128xf32, #tpu.memory_space<vmem>>, vector<1x1x128xf32>
    %27 = vector.shape_cast %26 : vector<1x1x128xf32> to vector<1x128xf32>
    %cst_17 = arith.constant 9.99999974E-6 : f32
    %28 = vector.broadcast %cst_17 : f32 to vector<1x128xf32>
    %29 = arith.addf %25, %28 : vector<1x128xf32>
    %30 = math.rsqrt %29 : vector<1x128xf32>
    %31 = arith.mulf %27, %30 : vector<1x128xf32>
    %c0_18 = arith.constant 0 : index
    %c0_19 = arith.constant 0 : index
    %c0_20 = arith.constant 0 : index
    %32 = vector.load %arg8[%c0_18, %c0_19, %c0_20] : memref<4x1x128xf32, #tpu.memory_space<vmem>>, vector<1x1x128xf32>
    %33 = vector.shape_cast %32 : vector<1x1x128xf32> to vector<1x128xf32>
    %34 = arith.mulf %20, %31 : vector<1x128xf32>
    %35 = arith.subf %33, %34 : vector<1x128xf32>
    %36 = vector.broadcast %31 : vector<1x128xf32> to vector<64x128xf32>
    %37 = arith.mulf %13, %36 : vector<64x128xf32>
    %38 = vector.broadcast %35 : vector<1x128xf32> to vector<64x128xf32>
    %39 = arith.addf %37, %38 : vector<64x128xf32>
    %cst_21 = arith.constant 0.000000e+00 : f32
    %40 = vector.broadcast %cst_21 : f32 to vector<64x128xf32>
    %41 = arith.maximumf %39, %40 : vector<64x128xf32>
    %c0_22 = arith.constant 0 : index
    %c0_23 = arith.constant 0 : index
    %c0_24 = arith.constant 0 : index
    %42 = vector.load %arg5[%c0_22, %c0_23, %c0_24] : memref<3x128x128xf32, #tpu.memory_space<vmem>>, vector<1x128x128xf32>
    %43 = vector.shape_cast %42 : vector<1x128x128xf32> to vector<128x128xf32>
    %cst_25 = arith.constant dense<0.000000e+00> : vector<64x128xf32>
    %44 = tpu.matmul %41, %43, %cst_25 {dimension_numbers = #tpu.dot_dimension_numbers<[1], [0], [0], [1], [0, 0, 1, 1], [], []>} : vector<64x128xf32>, vector<128x128xf32>, vector<64x128xf32> -> vector<64x128xf32>
    %c1 = arith.constant 1 : index
    %c0_26 = arith.constant 0 : index
    %c0_27 = arith.constant 0 : index
    %45 = vector.load %arg6[%c1, %c0_26, %c0_27] : memref<4x1x128xf32, #tpu.memory_space<vmem>>, vector<1x1x128xf32>
    %46 = vector.shape_cast %45 : vector<1x1x128xf32> to vector<1x128xf32>
    %47 = vector.broadcast %46 : vector<1x128xf32> to vector<64x128xf32>
    %48 = arith.addf %44, %47 : vector<64x128xf32>
    %49 = arith.mulf %48, %0 : vector<64x128xf32>
    %cst_28 = arith.constant dense<0.000000e+00> : vector<128xf32>
    %50 = vector.multi_reduction <add>, %49, %cst_28 [0] : vector<64x128xf32> to vector<128xf32>
    %51 = vector.shape_cast %50 : vector<128xf32> to vector<1x128xf32>
    %52 = arith.mulf %49, %48 : vector<64x128xf32>
    %cst_29 = arith.constant dense<0.000000e+00> : vector<128xf32>
    %53 = vector.multi_reduction <add>, %52, %cst_29 [0] : vector<64x128xf32> to vector<128xf32>
    %54 = vector.shape_cast %53 : vector<128xf32> to vector<1x128xf32>
    %55 = arith.mulf %51, %6 : vector<1x128xf32>
    %56 = arith.mulf %54, %6 : vector<1x128xf32>
    %57 = arith.mulf %55, %55 : vector<1x128xf32>
    %58 = arith.subf %56, %57 : vector<1x128xf32>
    %cst_30 = arith.constant 0.000000e+00 : f32
    %59 = vector.broadcast %cst_30 : f32 to vector<1x128xf32>
    %60 = arith.maximumf %58, %59 : vector<1x128xf32>
    %c1_31 = arith.constant 1 : index
    %c0_32 = arith.constant 0 : index
    %c0_33 = arith.constant 0 : index
    %61 = vector.load %arg7[%c1_31, %c0_32, %c0_33] : memref<4x1x128xf32, #tpu.memory_space<vmem>>, vector<1x1x128xf32>
    %62 = vector.shape_cast %61 : vector<1x1x128xf32> to vector<1x128xf32>
    %cst_34 = arith.constant 9.99999974E-6 : f32
    %63 = vector.broadcast %cst_34 : f32 to vector<1x128xf32>
    %64 = arith.addf %60, %63 : vector<1x128xf32>
    %65 = math.rsqrt %64 : vector<1x128xf32>
    %66 = arith.mulf %62, %65 : vector<1x128xf32>
    %c1_35 = arith.constant 1 : index
    %c0_36 = arith.constant 0 : index
    %c0_37 = arith.constant 0 : index
    %67 = vector.load %arg8[%c1_35, %c0_36, %c0_37] : memref<4x1x128xf32, #tpu.memory_space<vmem>>, vector<1x1x128xf32>
    %68 = vector.shape_cast %67 : vector<1x1x128xf32> to vector<1x128xf32>
    %69 = arith.mulf %55, %66 : vector<1x128xf32>
    %70 = arith.subf %68, %69 : vector<1x128xf32>
    %71 = vector.broadcast %66 : vector<1x128xf32> to vector<64x128xf32>
    %72 = arith.mulf %48, %71 : vector<64x128xf32>
    %73 = vector.broadcast %70 : vector<1x128xf32> to vector<64x128xf32>
    %74 = arith.addf %72, %73 : vector<64x128xf32>
    %cst_38 = arith.constant 0.000000e+00 : f32
    %75 = vector.broadcast %cst_38 : f32 to vector<64x128xf32>
    %76 = arith.maximumf %74, %75 : vector<64x128xf32>
    %c1_39 = arith.constant 1 : index
    %c0_40 = arith.constant 0 : index
    %c0_41 = arith.constant 0 : index
    %77 = vector.load %arg5[%c1_39, %c0_40, %c0_41] : memref<3x128x128xf32, #tpu.memory_space<vmem>>, vector<1x128x128xf32>
    %78 = vector.shape_cast %77 : vector<1x128x128xf32> to vector<128x128xf32>
    %cst_42 = arith.constant dense<0.000000e+00> : vector<64x128xf32>
    %79 = tpu.matmul %76, %78, %cst_42 {dimension_numbers = #tpu.dot_dimension_numbers<[1], [0], [0], [1], [0, 0, 1, 1], [], []>} : vector<64x128xf32>, vector<128x128xf32>, vector<64x128xf32> -> vector<64x128xf32>
    %c2 = arith.constant 2 : index
    %c0_43 = arith.constant 0 : index
    %c0_44 = arith.constant 0 : index
    %80 = vector.load %arg6[%c2, %c0_43, %c0_44] : memref<4x1x128xf32, #tpu.memory_space<vmem>>, vector<1x1x128xf32>
    %81 = vector.shape_cast %80 : vector<1x1x128xf32> to vector<1x128xf32>
    %82 = vector.broadcast %81 : vector<1x128xf32> to vector<64x128xf32>
    %83 = arith.addf %79, %82 : vector<64x128xf32>
    %84 = arith.mulf %83, %0 : vector<64x128xf32>
    %cst_45 = arith.constant dense<0.000000e+00> : vector<128xf32>
    %85 = vector.multi_reduction <add>, %84, %cst_45 [0] : vector<64x128xf32> to vector<128xf32>
    %86 = vector.shape_cast %85 : vector<128xf32> to vector<1x128xf32>
    %87 = arith.mulf %84, %83 : vector<64x128xf32>
    %cst_46 = arith.constant dense<0.000000e+00> : vector<128xf32>
    %88 = vector.multi_reduction <add>, %87, %cst_46 [0] : vector<64x128xf32> to vector<128xf32>
    %89 = vector.shape_cast %88 : vector<128xf32> to vector<1x128xf32>
    %90 = arith.mulf %86, %6 : vector<1x128xf32>
    %91 = arith.mulf %89, %6 : vector<1x128xf32>
    %92 = arith.mulf %90, %90 : vector<1x128xf32>
    %93 = arith.subf %91, %92 : vector<1x128xf32>
    %cst_47 = arith.constant 0.000000e+00 : f32
    %94 = vector.broadcast %cst_47 : f32 to vector<1x128xf32>
    %95 = arith.maximumf %93, %94 : vector<1x128xf32>
    %c2_48 = arith.constant 2 : index
    %c0_49 = arith.constant 0 : index
    %c0_50 = arith.constant 0 : index
    %96 = vector.load %arg7[%c2_48, %c0_49, %c0_50] : memref<4x1x128xf32, #tpu.memory_space<vmem>>, vector<1x1x128xf32>
    %97 = vector.shape_cast %96 : vector<1x1x128xf32> to vector<1x128xf32>
    %cst_51 = arith.constant 9.99999974E-6 : f32
    %98 = vector.broadcast %cst_51 : f32 to vector<1x128xf32>
    %99 = arith.addf %95, %98 : vector<1x128xf32>
    %100 = math.rsqrt %99 : vector<1x128xf32>
    %101 = arith.mulf %97, %100 : vector<1x128xf32>
    %c2_52 = arith.constant 2 : index
    %c0_53 = arith.constant 0 : index
    %c0_54 = arith.constant 0 : index
    %102 = vector.load %arg8[%c2_52, %c0_53, %c0_54] : memref<4x1x128xf32, #tpu.memory_space<vmem>>, vector<1x1x128xf32>
    %103 = vector.shape_cast %102 : vector<1x1x128xf32> to vector<1x128xf32>
    %104 = arith.mulf %90, %101 : vector<1x128xf32>
    %105 = arith.subf %103, %104 : vector<1x128xf32>
    %106 = vector.broadcast %101 : vector<1x128xf32> to vector<64x128xf32>
    %107 = arith.mulf %83, %106 : vector<64x128xf32>
    %108 = vector.broadcast %105 : vector<1x128xf32> to vector<64x128xf32>
    %109 = arith.addf %107, %108 : vector<64x128xf32>
    %cst_55 = arith.constant 0.000000e+00 : f32
    %110 = vector.broadcast %cst_55 : f32 to vector<64x128xf32>
    %111 = arith.maximumf %109, %110 : vector<64x128xf32>
    %c2_56 = arith.constant 2 : index
    %c0_57 = arith.constant 0 : index
    %c0_58 = arith.constant 0 : index
    %112 = vector.load %arg5[%c2_56, %c0_57, %c0_58] : memref<3x128x128xf32, #tpu.memory_space<vmem>>, vector<1x128x128xf32>
    %113 = vector.shape_cast %112 : vector<1x128x128xf32> to vector<128x128xf32>
    %cst_59 = arith.constant dense<0.000000e+00> : vector<64x128xf32>
    %114 = tpu.matmul %111, %113, %cst_59 {dimension_numbers = #tpu.dot_dimension_numbers<[1], [0], [0], [1], [0, 0, 1, 1], [], []>} : vector<64x128xf32>, vector<128x128xf32>, vector<64x128xf32> -> vector<64x128xf32>
    %c3 = arith.constant 3 : index
    %c0_60 = arith.constant 0 : index
    %c0_61 = arith.constant 0 : index
    %115 = vector.load %arg6[%c3, %c0_60, %c0_61] : memref<4x1x128xf32, #tpu.memory_space<vmem>>, vector<1x1x128xf32>
    %116 = vector.shape_cast %115 : vector<1x1x128xf32> to vector<1x128xf32>
    %117 = vector.broadcast %116 : vector<1x128xf32> to vector<64x128xf32>
    %118 = arith.addf %114, %117 : vector<64x128xf32>
    %119 = arith.mulf %118, %0 : vector<64x128xf32>
    %cst_62 = arith.constant dense<0.000000e+00> : vector<128xf32>
    %120 = vector.multi_reduction <add>, %119, %cst_62 [0] : vector<64x128xf32> to vector<128xf32>
    %121 = vector.shape_cast %120 : vector<128xf32> to vector<1x128xf32>
    %122 = arith.mulf %119, %118 : vector<64x128xf32>
    %cst_63 = arith.constant dense<0.000000e+00> : vector<128xf32>
    %123 = vector.multi_reduction <add>, %122, %cst_63 [0] : vector<64x128xf32> to vector<128xf32>
    %124 = vector.shape_cast %123 : vector<128xf32> to vector<1x128xf32>
    %125 = arith.mulf %121, %6 : vector<1x128xf32>
    %126 = arith.mulf %124, %6 : vector<1x128xf32>
    %127 = arith.mulf %125, %125 : vector<1x128xf32>
    %128 = arith.subf %126, %127 : vector<1x128xf32>
    %cst_64 = arith.constant 0.000000e+00 : f32
    %129 = vector.broadcast %cst_64 : f32 to vector<1x128xf32>
    %130 = arith.maximumf %128, %129 : vector<1x128xf32>
    %c3_65 = arith.constant 3 : index
    %c0_66 = arith.constant 0 : index
    %c0_67 = arith.constant 0 : index
    %131 = vector.load %arg7[%c3_65, %c0_66, %c0_67] : memref<4x1x128xf32, #tpu.memory_space<vmem>>, vector<1x1x128xf32>
    %132 = vector.shape_cast %131 : vector<1x1x128xf32> to vector<1x128xf32>
    %cst_68 = arith.constant 9.99999974E-6 : f32
    %133 = vector.broadcast %cst_68 : f32 to vector<1x128xf32>
    %134 = arith.addf %130, %133 : vector<1x128xf32>
    %135 = math.rsqrt %134 : vector<1x128xf32>
    %136 = arith.mulf %132, %135 : vector<1x128xf32>
    %c3_69 = arith.constant 3 : index
    %c0_70 = arith.constant 0 : index
    %c0_71 = arith.constant 0 : index
    %137 = vector.load %arg8[%c3_69, %c0_70, %c0_71] : memref<4x1x128xf32, #tpu.memory_space<vmem>>, vector<1x1x128xf32>
    %138 = vector.shape_cast %137 : vector<1x1x128xf32> to vector<1x128xf32>
    %139 = arith.mulf %125, %136 : vector<1x128xf32>
    %140 = arith.subf %138, %139 : vector<1x128xf32>
    %141 = vector.broadcast %136 : vector<1x128xf32> to vector<64x128xf32>
    %142 = arith.mulf %118, %141 : vector<64x128xf32>
    %143 = vector.broadcast %140 : vector<1x128xf32> to vector<64x128xf32>
    %144 = arith.addf %142, %143 : vector<64x128xf32>
    %cst_72 = arith.constant 0.000000e+00 : f32
    %145 = vector.broadcast %cst_72 : f32 to vector<64x128xf32>
    %146 = arith.maximumf %144, %145 : vector<64x128xf32>
    %c0_73 = arith.constant 0 : index
    %c0_74 = arith.constant 0 : index
    %147 = vector.load %arg2[%c0_73, %c0_74] : memref<64x128xf32, #tpu.memory_space<vmem>>, vector<64x128xf32>
    %148 = arith.mulf %146, %147 : vector<64x128xf32>
    %c0_75 = arith.constant 0 : index
    %c0_76 = arith.constant 0 : index
    %149 = vector.load %arg3[%c0_75, %c0_76] : memref<1x64xi32, #tpu.memory_space<vmem>>, vector<1x64xi32>
    %150 = tpu.iota {dimensions = array<i32: 0>} : vector<8x64xi32>
    %151 = vector.broadcast %149 : vector<1x64xi32> to vector<8x64xi32>
    %152 = arith.cmpi eq, %150, %151 : vector<8x64xi32>
    %153 = arith.extui %152 : vector<8x64xi1> to vector<8x64xi32>
    %154 = arith.sitofp %153 : vector<8x64xi32> to vector<8x64xf32>
    %cst_77 = arith.constant dense<0.000000e+00> : vector<8x128xf32>
    %155 = tpu.matmul %154, %148, %cst_77 {dimension_numbers = #tpu.dot_dimension_numbers<[1], [0], [0], [1], [0, 0, 1, 1], [], []>} : vector<8x64xf32>, vector<64x128xf32>, vector<8x128xf32> -> vector<8x128xf32>
    %c0_78 = arith.constant 0 : index
    %c0_79 = arith.constant 0 : index
    %156 = vector.load %arg9[%c0_78, %c0_79] : memref<128x32xf32, #tpu.memory_space<vmem>>, vector<128x32xf32>
    %cst_80 = arith.constant dense<0.000000e+00> : vector<8x32xf32>
    %157 = tpu.matmul %155, %156, %cst_80 {dimension_numbers = #tpu.dot_dimension_numbers<[1], [0], [0], [1], [0, 0, 1, 1], [], []>} : vector<8x128xf32>, vector<128x32xf32>, vector<8x32xf32> -> vector<8x32xf32>
    %c0_81 = arith.constant 0 : index
    %c0_82 = arith.constant 0 : index
    %158 = vector.load %arg10[%c0_81, %c0_82] : memref<8x32xf32, #tpu.memory_space<vmem>>, vector<8x32xf32>
    tpu.vector_store %arg10[%c0_81, %c0_82], %157 {strides = array<i32>} : memref<8x32xf32, #tpu.memory_space<vmem>>, vector<8x32xf32>,
    return
  }
}

</mosaic_0001>

<llo_original>
// kernel: tpu_custom_call.1
$region0: #{tpu_custom_call.1}
  #allocation0 [shape = 'u32[]', space=smem, size = 0x4, offset = 0x4, fixed_abs, tag = 'smem constant byte address 0x4 - core index']
  #allocation1 [shape = 'u32[144,128]{1,0:T(1,128)}', space=vmem, size = 0x12000, scoped, tag = 'internal scratch']
  %s0 = inlined_call_operand.hbm [shape: f32[64,128], index: 0, kind: input, shape index: {}]
  %s1 = inlined_call_operand.hbm [shape: f32[64,128], index: 1, kind: input, shape index: {}]
  %s2 = inlined_call_operand.hbm [shape: f32[64,128], index: 2, kind: input, shape index: {}]
  %s3 = inlined_call_operand.hbm [shape: s32[1,64], index: 3, kind: input, shape index: {}]
  %s4 = inlined_call_operand.hbm [shape: f32[128,128], index: 4, kind: input, shape index: {}]
  %s5 = inlined_call_operand.hbm [shape: f32[3,128,128], index: 5, kind: input, shape index: {}]
  %s6 = inlined_call_operand.hbm [shape: f32[4,1,128], index: 6, kind: input, shape index: {}]
  %s7 = inlined_call_operand.hbm [shape: f32[4,1,128], index: 7, kind: input, shape index: {}]
  %s8 = inlined_call_operand.hbm [shape: f32[4,1,128], index: 8, kind: input, shape index: {}]
  %s9 = inlined_call_operand.hbm [shape: f32[128,32], index: 9, kind: input, shape index: {}]
  %s10 = inlined_call_operand.hbm [shape: f32[8,32], index: 10, kind: output, shape index: {}]
  %s11 = sld [smem:[#allocation0]]
  $region90: #{tpu_custom_call.1} parent=0
    _
  %s13 = ssub.s32 1, %s11
  %s14 = scalar_select 0, %s13, %s11
  $region1: #{tpu_custom_call.1} parent=0
    #allocation2 [shape = 'u8[32768]{0}', space=vmem, size = 0x8000, scoped, tag = 'input window, operand 0, single buffered']
    #allocation3 [shape = 's32[1]{0}', space=sflag, size = 0x4, scoped, tag = 'scoped memory for tpu_custom_call.1']
    #allocation4 [shape = 's32[1]{0}', space=sflag, size = 0x4, scoped, tag = 'scoped memory for tpu_custom_call.1']
    #allocation5 [shape = 'u8[32768]{0}', space=vmem, size = 0x8000, scoped, tag = 'input window, operand 1, single buffered']
    #allocation6 [shape = 's32[1]{0}', space=sflag, size = 0x4, scoped, tag = 'scoped memory for tpu_custom_call.1']
    #allocation7 [shape = 'u8[32768]{0}', space=vmem, size = 0x8000, scoped, tag = 'input window, operand 2, single buffered']
    #allocation8 [shape = 'u8[512]{0}', space=vmem, size = 0x400, scoped, tag = 'input window, operand 3, single buffered']
    #allocation9 [shape = 's32[1]{0}', space=sflag, size = 0x4, scoped, tag = 'scoped memory for tpu_custom_call.1']
    #allocation10 [shape = 'u8[65536]{0}', space=vmem, size = 0x10000, scoped, tag = 'input window, operand 4, single buffered']
    #allocation11 [shape = 'u8[196608]{0}', space=vmem, size = 0x30000, scoped, tag = 'input window, operand 5, single buffered']
    #allocation12 [shape = 's32[1]{0}', space=sflag, size = 0x4, scoped, tag = 'scoped memory for tpu_custom_call.1']
    #allocation13 [shape = 'u8[2048]{0}', space=vmem, size = 0x800, scoped, tag = 'input window, operand 6, single buffered']
    #allocation14 [shape = 'u8[2048]{0}', space=vmem, size = 0x800, scoped, tag = 'input window, operand 7, single buffered']
    #allocation15 [shape = 's32[1]{0}', space=sflag, size = 0x4, scoped, tag = 'scoped memory for tpu_custom_call.1']
    #allocation16 [shape = 'u8[2048]{0}', space=vmem, size = 0x800, scoped, tag = 'input window, operand 8, single buffered']
    #allocation17 [shape = 'u8[65536]{0}', space=vmem, size = 0x10000, scoped, tag = 'input window, operand 9, single buffered']
    #allocation18 [shape = 's32[1]{0}', space=sflag, size = 0x4, scoped, tag = 'scoped memory for tpu_custom_call.1']
    #allocation19 [shape = 'u8[4096]{0}', space=vmem, size = 0x1000, scoped, tag = 'output window, operand 0, single buffered']
    %15 = vsyncpa [#allocation3], 0
    %16 = vsyncpa [#allocation6], 0
    %17 = vsyncpa [#allocation9], 0
    %18 = vsyncpa [#allocation12], 0
    %19 = vsyncpa [#allocation15], 0
    %20 = vsyncpa [#allocation18], 0
    %21 = vsyncpa [#allocation4], 0
    // Predicated region
    $region2: #{tpu_custom_call.1} parent=1 // pred_check
      _
    $region3: #{tpu_custom_call.1} parent=1 // pred_check_branch
      %23 = sbr.rel (0) target = $region5
    $region4: #{tpu_custom_call.1} parent=1 // pred_region
      %s25 = ssub.s32 1024, 1024
      %26 = vsyncadd [#allocation3], %s25
      %s27 = sshll.u32 [#allocation2], 4
      %s28 = int_to_ptr.vmem [resolvable:$true] %s27
      %33 = dma.hbm_to_vmem [thread:$0]  %s0, 1024, %s28, [#allocation3], 128, 128, 8
    $region5: #{tpu_custom_call.1} parent=1 // pred_fallthru
      _
    // Predicated region
    $region6: #{tpu_custom_call.1} parent=1 // pred_check
      _
    $region7: #{tpu_custom_call.1} parent=1 // pred_check_branch
      %35 = sbr.rel (0) target = $region9
    $region8: #{tpu_custom_call.1} parent=1 // pred_region
      %s37 = ssub.s32 1024, 1024
      %38 = vsyncadd [#allocation6], %s37
      %s39 = sshll.u32 [#allocation5], 4
      %s40 = int_to_ptr.vmem [resolvable:$true] %s39
      %45 = dma.hbm_to_vmem [thread:$0]  %s1, 1024, %s40, [#allocation6], 128, 128, 8
    $region9: #{tpu_custom_call.1} parent=1 // pred_fallthru
      _
    // Predicated region
    $region10: #{tpu_custom_call.1} parent=1 // pred_check
      _
    $region11: #{tpu_custom_call.1} parent=1 // pred_check_branch
      %47 = sbr.rel (0) target = $region13
    $region12: #{tpu_custom_call.1} parent=1 // pred_region
      %s49 = ssub.s32 1024, 1024
      %50 = vsyncadd [#allocation6], %s49
      %s51 = sshll.u32 [#allocation7], 4
      %s52 = int_to_ptr.vmem [resolvable:$true] %s51
      %57 = dma.hbm_to_vmem [thread:$0]  %s2, 1024, %s52, [#allocation6], 128, 128, 8
    $region13: #{tpu_custom_call.1} parent=1 // pred_fallthru
      _
    // Predicated region
    $region14: #{tpu_custom_call.1} parent=1 // pred_check
      _
    $region15: #{tpu_custom_call.1} parent=1 // pred_check_branch
      %59 = sbr.rel (0) target = $region17
    $region16: #{tpu_custom_call.1} parent=1 // pred_region
      %s61 = ssub.s32 16, 16
      %62 = vsyncadd [#allocation9], %s61
      %s64 = sshll.u32 [#allocation8], 4
      %s65 = int_to_ptr.vmem [resolvable:$true] %s64
      %67 = dma.hbm_to_vmem [thread:$0]  %s3, 16, %s65, [#allocation9]
    $region17: #{tpu_custom_call.1} parent=1 // pred_fallthru
      _
    // Predicated region
    $region18: #{tpu_custom_call.1} parent=1 // pred_check
      _
    $region19: #{tpu_custom_call.1} parent=1 // pred_check_branch
      %69 = sbr.rel (0) target = $region21
    $region20: #{tpu_custom_call.1} parent=1 // pred_region
      %s71 = ssub.s32 2048, 2048
      %72 = vsyncadd [#allocation9], %s71
      %s73 = sshll.u32 [#allocation10], 4
      %s74 = int_to_ptr.vmem [resolvable:$true] %s73
      %79 = dma.hbm_to_vmem [thread:$0]  %s4, 2048, %s74, [#allocation9], 128, 128, 8
    $region21: #{tpu_custom_call.1} parent=1 // pred_fallthru
      _
    // Predicated region
    $region22: #{tpu_custom_call.1} parent=1 // pred_check
      _
    $region23: #{tpu_custom_call.1} parent=1 // pred_check_branch
      %81 = sbr.rel (0) target = $region25
    $region24: #{tpu_custom_call.1} parent=1 // pred_region
      %s83 = ssub.s32 6144, 6144
      %84 = vsyncadd [#allocation12], %s83
      %s85 = sshll.u32 [#allocation11], 4
      %s86 = int_to_ptr.vmem [resolvable:$true] %s85
      %91 = dma.hbm_to_vmem [thread:$0]  %s5, 6144, %s86, [#allocation12], 128, 128, 8
    $region25: #{tpu_custom_call.1} parent=1 // pred_fallthru
      _
    // Predicated region
    $region26: #{tpu_custom_call.1} parent=1 // pred_check
      _
    $region27: #{tpu_custom_call.1} parent=1 // pred_check_branch
      %93 = sbr.rel (0) target = $region29
    $region28: #{tpu_custom_call.1} parent=1 // pred_region
      %s95 = ssub.s32 64, 64
      %96 = vsyncadd [#allocation12], %s95
      %s97 = sshll.u32 [#allocation13], 4
      %s98 = int_to_ptr.vmem [resolvable:$true] %s97
      %103 = dma.hbm_to_vmem [thread:$0]  %s6, 64, %s98, [#allocation12], 16, 16, 1
    $region29: #{tpu_custom_call.1} parent=1 // pred_fallthru
      _
    // Predicated region
    $region30: #{tpu_custom_call.1} parent=1 // pred_check
      _
    $region31: #{tpu_custom_call.1} parent=1 // pred_check_branch
      %105 = sbr.rel (0) target = $region33
    $region32: #{tpu_custom_call.1} parent=1 // pred_region
      %s107 = ssub.s32 64, 64
      %108 = vsyncadd [#allocation15], %s107
      %s109 = sshll.u32 [#allocation14], 4
      %s110 = int_to_ptr.vmem [resolvable:$true] %s109
      %115 = dma.hbm_to_vmem [thread:$0]  %s7, 64, %s110, [#allocation15], 16, 16, 1
    $region33: #{tpu_custom_call.1} parent=1 // pred_fallthru
      _
    // Predicated region
    $region34: #{tpu_custom_call.1} parent=1 // pred_check
      _
    $region35: #{tpu_custom_call.1} parent=1 // pred_check_branch
      %117 = sbr.rel (0) target = $region37
    $region36: #{tpu_custom_call.1} parent=1 // pred_region
      %s119 = ssub.s32 64, 64
      %120 = vsyncadd [#allocation15], %s119
      %s121 = sshll.u32 [#allocation16], 4
      %s122 = int_to_ptr.vmem [resolvable:$true] %s121
      %127 = dma.hbm_to_vmem [thread:$0]  %s8, 64, %s122, [#allocation15], 16, 16, 1
    $region37: #{tpu_custom_call.1} parent=1 // pred_fallthru
      _
    // Predicated region
    $region38: #{tpu_custom_call.1} parent=1 // pred_check
      _
    $region39: #{tpu_custom_call.1} parent=1 // pred_check_branch
      %129 = sbr.rel (0) target = $region41
    $region40: #{tpu_custom_call.1} parent=1 // pred_region
      %s131 = ssub.s32 2048, 2048
      %132 = vsyncadd [#allocation18], %s131
      %s133 = sshll.u32 [#allocation17], 4
      %s134 = int_to_ptr.vmem [resolvable:$true] %s133
      %139 = dma.hbm_to_vmem [thread:$0]  %s9, 2048, %s134, [#allocation18], 128, 128, 8
    $region41: #{tpu_custom_call.1} parent=1 // pred_fallthru
      _
    // Predicated region
    $region42: #{tpu_custom_call.1} parent=1 // pred_check
      _
    $region43: #{tpu_custom_call.1} parent=1 // pred_check_branch
      %141 = sbr.rel (0) target = $region45
    $region44: #{tpu_custom_call.1} parent=1 // pred_region
      %142 = dma.done [#allocation3], 1024
    $region45: #{tpu_custom_call.1} parent=1 // pred_fallthru
      _
    // Predicated region
    $region46: #{tpu_custom_call.1} parent=1 // pred_check
      _
    $region47: #{tpu_custom_call.1} parent=1 // pred_check_branch
      %144 = sbr.rel (0) target = $region49
    $region48: #{tpu_custom_call.1} parent=1 // pred_region
      %145 = dma.done [#allocation6], 1024
    $region49: #{tpu_custom_call.1} parent=1 // pred_fallthru
      _
    // Predicated region
    $region50: #{tpu_custom_call.1} parent=1 // pred_check
      _
    $region51: #{tpu_custom_call.1} parent=1 // pred_check_branch
      %147 = sbr.rel (0) target = $region53
    $region52: #{tpu_custom_call.1} parent=1 // pred_region
      %148 = dma.done [#allocation6], 1024
    $region53: #{tpu_custom_call.1} parent=1 // pred_fallthru
      _
    // Predicated region
    $region54: #{tpu_custom_call.1} parent=1 // pred_check
      _
    $region55: #{tpu_custom_call.1} parent=1 // pred_check_branch
      %150 = sbr.rel (0) target = $region57
    $region56: #{tpu_custom_call.1} parent=1 // pred_region
      %151 = dma.done [#allocation9], 16
    $region57: #{tpu_custom_call.1} parent=1 // pred_fallthru
      _
    // Predicated region
    $region58: #{tpu_custom_call.1} parent=1 // pred_check
      _
    $region59: #{tpu_custom_call.1} parent=1 // pred_check_branch
      %153 = sbr.rel (0) target = $region61
    $region60: #{tpu_custom_call.1} parent=1 // pred_region
      %154 = dma.done [#allocation9], 2048
    $region61: #{tpu_custom_call.1} parent=1 // pred_fallthru
      _
    // Predicated region
    $region62: #{tpu_custom_call.1} parent=1 // pred_check
      _
    $region63: #{tpu_custom_call.1} parent=1 // pred_check_branch
      %156 = sbr.rel (0) target = $region65
    $region64: #{tpu_custom_call.1} parent=1 // pred_region
      %157 = dma.done [#allocation12], 6144
    $region65: #{tpu_custom_call.1} parent=1 // pred_fallthru
      _
    // Predicated region
    $region66: #{tpu_custom_call.1} parent=1 // pred_check
      _
    $region67: #{tpu_custom_call.1} parent=1 // pred_check_branch
      %159 = sbr.rel (0) target = $region69
    $region68: #{tpu_custom_call.1} parent=1 // pred_region
      %160 = dma.done [#allocation12], 64
    $region69: #{tpu_custom_call.1} parent=1 // pred_fallthru
      _
    // Predicated region
    $region70: #{tpu_custom_call.1} parent=1 // pred_check
      _
    $region71: #{tpu_custom_call.1} parent=1 // pred_check_branch
      %162 = sbr.rel (0) target = $region73
    $region72: #{tpu_custom_call.1} parent=1 // pred_region
      %163 = dma.done [#allocation15], 64
    $region73: #{tpu_custom_call.1} parent=1 // pred_fallthru
      _
    // Predicated region
    $region74: #{tpu_custom_call.1} parent=1 // pred_check
      _
    $region75: #{tpu_custom_call.1} parent=1 // pred_check_branch
      %165 = sbr.rel (0) target = $region77
    $region76: #{tpu_custom_call.1} parent=1 // pred_region
      %166 = dma.done [#allocation15], 64
    $region77: #{tpu_custom_call.1} parent=1 // pred_fallthru
      _
    // Predicated region
    $region78: #{tpu_custom_call.1} parent=1 // pred_check
      _
    $region79: #{tpu_custom_call.1} parent=1 // pred_check_branch
      %168 = sbr.rel (0) target = $region81
    $region80: #{tpu_custom_call.1} parent=1 // pred_region
      %169 = dma.done [#allocation18], 2048
    $region81: #{tpu_custom_call.1} parent=1 // pred_fallthru
      _
    %v170 = vld [vmem:[#allocation5] sm:$0xff]
    %v171 = vld [vmem:[#allocation5 + $0x8] sm:$0xff]
    %v172 = vld [vmem:[#allocation5 + $0x10] sm:$0xff]
    %v173 = vld [vmem:[#allocation5 + $0x18] sm:$0xff]
    %v174 = vld [vmem:[#allocation5 + $0x20] sm:$0xff]
    %v175 = vld [vmem:[#allocation5 + $0x28] sm:$0xff]
    %v176 = vld [vmem:[#allocation5 + $0x30] sm:$0xff]
    %v177 = vld [vmem:[#allocation5 + $0x38] sm:$0xff]
    %v178 = vadd.f32 %v170, %v171
    %v179 = vadd.f32 %v178, %v172
    %v180 = vadd.f32 %v179, %v173
    %v181 = vadd.f32 %v180, %v174
    %v182 = vadd.f32 %v181, %v175
    %v183 = vadd.f32 %v182, %v176
    %v184 = vadd.f32 %v183, %v177
    %v185 = vrot.slane %v184, 4
    %v186 = vadd.f32 %v184, %v185
    %v187 = vrot.slane %v186, 2
    %v188 = vadd.f32 %v186, %v187
    %v189 = vrot.slane %v188, 1
    %v190 = vadd.f32 %v188, %v189
    %v191 = vmax.f32 %v190, 1.0
    %v192 = vrcp.pop %v191
    %v193 = vmul.f32 1.0, %v192
    %v194 = vld [vmem:[#allocation2] sm:$0xff]
    %v195 = vld [vmem:[#allocation2 + $0x8] sm:$0xff]
    %v196 = vld [vmem:[#allocation2 + $0x10] sm:$0xff]
    %v197 = vld [vmem:[#allocation2 + $0x18] sm:$0xff]
    %v198 = vld [vmem:[#allocation2 + $0x20] sm:$0xff]
    %v199 = vld [vmem:[#allocation2 + $0x28] sm:$0xff]
    %v200 = vld [vmem:[#allocation2 + $0x30] sm:$0xff]
    %v201 = vld [vmem:[#allocation2 + $0x38] sm:$0xff]
    %v202 = vld [vmem:[#allocation10] sm:$0xff]
    %v203 = vld [vmem:[#allocation10 + $0x8] sm:$0xff]
    %v204 = vld [vmem:[#allocation10 + $0x10] sm:$0xff]
    %v205 = vld [vmem:[#allocation10 + $0x18] sm:$0xff]
    %v206 = vld [vmem:[#allocation10 + $0x20] sm:$0xff]
    %v207 = vld [vmem:[#allocation10 + $0x28] sm:$0xff]
    %v208 = vld [vmem:[#allocation10 + $0x30] sm:$0xff]
    %v209 = vld [vmem:[#allocation10 + $0x38] sm:$0xff]
    %v210 = vld [vmem:[#allocation10 + $0x40] sm:$0xff]
    %v211 = vld [vmem:[#allocation10 + $0x48] sm:$0xff]
    %v212 = vld [vmem:[#allocation10 + $0x50] sm:$0xff]
    %v213 = vld [vmem:[#allocation10 + $0x58] sm:$0xff]
    %v214 = vld [vmem:[#allocation10 + $0x60] sm:$0xff]
    %v215 = vld [vmem:[#allocation10 + $0x68] sm:$0xff]
    %v216 = vld [vmem:[#allocation10 + $0x70] sm:$0xff]
    %v217 = vld [vmem:[#allocation10 + $0x78] sm:$0xff]
    %v218 = vld [vmem:[#allocation13] sm:$0x1]
    %v220 = vlaneseq
    %v221 = vshrl.u32 %v220, 7
    %v222 = vsub.s32 0, %v221
    %v223 = vrot.slane %v218, %v222
    %225 = vmatprep.subr.mxu0 0.0
    %226 = vmatpush1.msra.mxu0 %v202
    %227 = vmatprep.subr.mxu0 0.0
    %228 = vmatpush1.msra.mxu0 %v203
    %229 = vmatprep.subr.mxu0 0.0
    %230 = vmatpush1.msra.mxu0 %v204
    %231 = vmatprep.subr.mxu0 0.0
    %232 = vmatpush1.msra.mxu0 %v205
    %233 = vmatprep.subr.mxu0 0.0
    %234 = vmatpush1.msra.mxu0 %v206
    %235 = vmatprep.subr.mxu0 0.0
    %236 = vmatpush1.msra.mxu0 %v207
    %237 = vmatprep.subr.mxu0 0.0
    %238 = vmatpush1.msra.mxu0 %v208
    %239 = vmatprep.subr.mxu0 0.0
    %240 = vmatpush1.msra.mxu0 %v209
    %241 = vmatprep.subr.mxu0 0.0
    %242 = vmatpush1.msra.mxu0 %v210
    %243 = vmatprep.subr.mxu0 0.0
    %244 = vmatpush1.msra.mxu0 %v211
    %245 = vmatprep.subr.mxu0 0.0
    %246 = vmatpush1.msra.mxu0 %v212
    %247 = vmatprep.subr.mxu0 0.0
    %248 = vmatpush1.msra.mxu0 %v213
    %249 = vmatprep.subr.mxu0 0.0
    %250 = vmatpush1.msra.mxu0 %v214
    %251 = vmatprep.subr.mxu0 0.0
    %252 = vmatpush1.msra.mxu0 %v215
    %253 = vmatprep.subr.mxu0 0.0
    %254 = vmatpush1.msra.mxu0 %v216
    %255 = vmatprep.subr.mxu0 0.0
    %256 = vmatpush1.msra.mxu0 %v217
    %257 = vmatprep.subr.mxu0 0.0
    %258 = vmatpush1.msra.mxu0 0.0
    %259 = vmatprep.subr.mxu0 0.0
    %260 = vmatpush1.msra.mxu0 0.0
    %261 = vmatprep.subr.mxu0 0.0
    %262 = vmatpush1.msra.mxu0 0.0
    %263 = vmatprep.subr.mxu0 0.0
    %264 = vmatpush1.msra.mxu0 0.0
    %265 = vmatprep.subr.mxu0 0.0
    %266 = vmatpush1.msra.mxu0 0.0
    %267 = vmatprep.subr.mxu0 0.0
    %268 = vmatpush1.msra.mxu0 0.0
    %269 = vmatprep.subr.mxu0 0.0
    %270 = vmatpush1.msra.mxu0 0.0
    %271 = vmatprep.subr.mxu0 0.0
    %272 = vmatpush1.msra.mxu0 0.0
    %273 = vmatprep.subr.mxu0 0.0
    %274 = vmatpush1.msra.mxu0 0.0
    %275 = vmatprep.subr.mxu0 0.0
    %276 = vmatpush1.msra.mxu0 0.0
    %277 = vmatprep.subr.mxu0 0.0
    %278 = vmatpush1.msra.mxu0 0.0
    %279 = vmatprep.subr.mxu0 0.0
    %280 = vmatpush1.msra.mxu0 0.0
    %281 = vmatprep.subr.mxu0 0.0
    %282 = vmatpush1.msra.mxu0 0.0
    %283 = vmatprep.subr.mxu0 0.0
    %284 = vmatpush1.msra.mxu0 0.0
    %285 = vmatprep.subr.mxu0 0.0
    %286 = vmatpush1.msra.mxu0 0.0
    %287 = vmatprep.subr.mxu0 0.0
    %288 = vmatpush1.msra.mxu0 0.0
    %289 = vmatprep.mubr.f32.mxu0 0.0
    %290 = vmatmul.mubr.f32.gmra.mrb[0].mxu0 %v194
    %v291 = vpop.f32.mrb[0].mxu0
    %v292 = vadd.f32 %v223, %v291
    %v293 = vpop.f32.mrb[0].mxu0
    %294 = vmatprep.mubr.f32.mxu0 0.0
    %295 = vmatmul.mubr.f32.gmra.mrb[0].mxu0 %v195
    %v296 = vpop.f32.mrb[0].mxu0
    %v297 = vadd.f32 %v223, %v296
    %v298 = vpop.f32.mrb[0].mxu0
    %299 = vmatprep.mubr.f32.mxu0 0.0
    %300 = vmatmul.mubr.f32.gmra.mrb[0].mxu0 %v196
    %v301 = vpop.f32.mrb[0].mxu0
    %v302 = vadd.f32 %v223, %v301
    %v303 = vpop.f32.mrb[0].mxu0
    %304 = vmatprep.mubr.f32.mxu0 0.0
    %305 = vmatmul.mubr.f32.gmra.mrb[0].mxu0 %v197
    %v306 = vpop.f32.mrb[0].mxu0
    %v307 = vadd.f32 %v223, %v306
    %v308 = vpop.f32.mrb[0].mxu0
    %309 = vmatprep.mubr.f32.mxu0 0.0
    %310 = vmatmul.mubr.f32.gmra.mrb[0].mxu0 %v198
    %v311 = vpop.f32.mrb[0].mxu0
    %v312 = vadd.f32 %v223, %v311
    %v313 = vpop.f32.mrb[0].mxu0
    %314 = vmatprep.mubr.f32.mxu0 0.0
    %315 = vmatmul.mubr.f32.gmra.mrb[0].mxu0 %v199
    %v316 = vpop.f32.mrb[0].mxu0
    %v317 = vadd.f32 %v223, %v316
    %v318 = vpop.f32.mrb[0].mxu0
    %319 = vmatprep.mubr.f32.mxu0 0.0
    %320 = vmatmul.mubr.f32.gmra.mrb[0].mxu0 %v200
    %v321 = vpop.f32.mrb[0].mxu0
    %v322 = vadd.f32 %v223, %v321
    %v323 = vpop.f32.mrb[0].mxu0
    %324 = vmatprep.mubr.f32.mxu0 0.0
    %325 = vmatmul.mubr.f32.gmra.mrb[0].mxu0 %v201
    %v326 = vpop.f32.mrb[0].mxu0
    %v327 = vadd.f32 %v223, %v326
    %v328 = vpop.f32.mrb[0].mxu0
    %329 = vdwg.mxu0
    %v330 = vmul.f32 %v292, %v170
    %v331 = vmul.f32 %v297, %v171
    %v332 = vmul.f32 %v302, %v172
    %v333 = vmul.f32 %v307, %v173
    %v334 = vmul.f32 %v312, %v174
    %v335 = vmul.f32 %v317, %v175
    %v336 = vmul.f32 %v322, %v176
    %v337 = vmul.f32 %v327, %v177
    %v338 = vadd.f32 %v330, %v331
    %v339 = vadd.f32 %v338, %v332
    %v340 = vadd.f32 %v339, %v333
    %v341 = vadd.f32 %v340, %v334
    %v342 = vadd.f32 %v341, %v335
    %v343 = vadd.f32 %v342, %v336
    %v344 = vadd.f32 %v343, %v337
    %v345 = vrot.slane %v344, 4
    %v346 = vadd.f32 %v344, %v345
    %v347 = vrot.slane %v346, 2
    %v348 = vadd.f32 %v346, %v347
    %v349 = vrot.slane %v348, 1
    %v350 = vadd.f32 %v348, %v349
    %v351 = vmul.f32 %v330, %v292
    %v352 = vmul.f32 %v331, %v297
    %v353 = vmul.f32 %v332, %v302
    %v354 = vmul.f32 %v333, %v307
    %v355 = vmul.f32 %v334, %v312
    %v356 = vmul.f32 %v335, %v317
    %v357 = vmul.f32 %v336, %v322
    %v358 = vmul.f32 %v337, %v327
    %v359 = vadd.f32 %v351, %v352
    %v360 = vadd.f32 %v359, %v353
    %v361 = vadd.f32 %v360, %v354
    %v362 = vadd.f32 %v361, %v355
    %v363 = vadd.f32 %v362, %v356
    %v364 = vadd.f32 %v363, %v357
    %v365 = vadd.f32 %v364, %v358
    %v366 = vrot.slane %v365, 4
    %v367 = vadd.f32 %v365, %v366
    %v368 = vrot.slane %v367, 2
    %v369 = vadd.f32 %v367, %v368
    %v370 = vrot.slane %v369, 1
    %v371 = vadd.f32 %v369, %v370
    %v372 = vmul.f32 %v350, %v193
    %v373 = vmul.f32 %v371, %v193
    %v374 = vmul.f32 %v372, %v372
    %v375 = vsub.f32 %v373, %v374
    %v376 = vmax.f32 %v375, 0.0
    %v377 = vld [vmem:[#allocation14] sm:$0x1]
    %v378 = vadd.f32 %v376, 1e-05
    %v379 = vrsqrt.pop %v378
    %v380 = vmul.f32 %v377, %v379
    %v381 = vld [vmem:[#allocation16] sm:$0x1]
    %v382 = vmul.f32 %v372, %v380
    %v383 = vsub.f32 %v381, %v382
    %v385 = vlaneseq
    %v386 = vshrl.u32 %v385, 7
    %v387 = vsub.s32 0, %v386
    %v388 = vrot.slane %v380, %v387
    %v390 = vmul.f32 %v292, %v388
    %v391 = vmul.f32 %v297, %v388
    %v392 = vmul.f32 %v302, %v388
    %v393 = vmul.f32 %v307, %v388
    %v394 = vmul.f32 %v312, %v388
    %v395 = vmul.f32 %v317, %v388
    %v396 = vmul.f32 %v322, %v388
    %v397 = vmul.f32 %v327, %v388
    %v399 = vlaneseq
    %v400 = vshrl.u32 %v399, 7
    %v401 = vsub.s32 0, %v400
    %v402 = vrot.slane %v383, %v401
    %v404 = vadd.f32 %v390, %v402
    %v405 = vadd.f32 %v391, %v402
    %v406 = vadd.f32 %v392, %v402
    %v407 = vadd.f32 %v393, %v402
    %v408 = vadd.f32 %v394, %v402
    %v409 = vadd.f32 %v395, %v402
    %v410 = vadd.f32 %v396, %v402
    %v411 = vadd.f32 %v397, %v402
    %v412 = vmax.f32 %v404, 0.0
    %v413 = vmax.f32 %v405, 0.0
    %v414 = vmax.f32 %v406, 0.0
    %v415 = vmax.f32 %v407, 0.0
    %v416 = vmax.f32 %v408, 0.0
    %v417 = vmax.f32 %v409, 0.0
    %v418 = vmax.f32 %v410, 0.0
    %v419 = vmax.f32 %v411, 0.0
    %v420 = vld [vmem:[#allocation11] sm:$0xff]
    %v421 = vld [vmem:[#allocation11 + $0x8] sm:$0xff]
    %v422 = vld [vmem:[#allocation11 + $0x10] sm:$0xff]
    %v423 = vld [vmem:[#allocation11 + $0x18] sm:$0xff]
    %v424 = vld [vmem:[#allocation11 + $0x20] sm:$0xff]
    %v425 = vld [vmem:[#allocation11 + $0x28] sm:$0xff]
    %v426 = vld [vmem:[#allocation11 + $0x30] sm:$0xff]
    %v427 = vld [vmem:[#allocation11 + $0x38] sm:$0xff]
    %v428 = vld [vmem:[#allocation11 + $0x40] sm:$0xff]
    %v429 = vld [vmem:[#allocation11 + $0x48] sm:$0xff]
    %v430 = vld [vmem:[#allocation11 + $0x50] sm:$0xff]
    %v431 = vld [vmem:[#allocation11 + $0x58] sm:$0xff]
    %v432 = vld [vmem:[#allocation11 + $0x60] sm:$0xff]
    %v433 = vld [vmem:[#allocation11 + $0x68] sm:$0xff]
    %v434 = vld [vmem:[#allocation11 + $0x70] sm:$0xff]
    %v435 = vld [vmem:[#allocation11 + $0x78] sm:$0xff]
    %s436 = scalar_lea.vmem [#allocation13], 1
    %v437 = vld [vmem:[%s436] sm:$0x1]
    %v439 = vlaneseq
    %v440 = vshrl.u32 %v439, 7
    %v441 = vsub.s32 0, %v440
    %v442 = vrot.slane %v437, %v441
    %444 = vmatprep.subr.mxu0 0.0
    %445 = vmatpush1.msra.mxu0 %v420
    %446 = vmatprep.subr.mxu0 0.0
    %447 = vmatpush1.msra.mxu0 %v421
    %448 = vmatprep.subr.mxu0 0.0
    %449 = vmatpush1.msra.mxu0 %v422
    %450 = vmatprep.subr.mxu0 0.0
    %451 = vmatpush1.msra.mxu0 %v423
    %452 = vmatprep.subr.mxu0 0.0
    %453 = vmatpush1.msra.mxu0 %v424
    %454 = vmatprep.subr.mxu0 0.0
    %455 = vmatpush1.msra.mxu0 %v425
    %456 = vmatprep.subr.mxu0 0.0
    %457 = vmatpush1.msra.mxu0 %v426
    %458 = vmatprep.subr.mxu0 0.0
    %459 = vmatpush1.msra.mxu0 %v427
    %460 = vmatprep.subr.mxu0 0.0
    %461 = vmatpush1.msra.mxu0 %v428
    %462 = vmatprep.subr.mxu0 0.0
    %463 = vmatpush1.msra.mxu0 %v429
    %464 = vmatprep.subr.mxu0 0.0
    %465 = vmatpush1.msra.mxu0 %v430
    %466 = vmatprep.subr.mxu0 0.0
    %467 = vmatpush1.msra.mxu0 %v431
    %468 = vmatprep.subr.mxu0 0.0
    %469 = vmatpush1.msra.mxu0 %v432
    %470 = vmatprep.subr.mxu0 0.0
    %471 = vmatpush1.msra.mxu0 %v433
    %472 = vmatprep.subr.mxu0 0.0
    %473 = vmatpush1.msra.mxu0 %v434
    %474 = vmatprep.subr.mxu0 0.0
    %475 = vmatpush1.msra.mxu0 %v435
    %476 = vmatprep.subr.mxu0 0.0
    %477 = vmatpush1.msra.mxu0 0.0
    %478 = vmatprep.subr.mxu0 0.0
    %479 = vmatpush1.msra.mxu0 0.0
    %480 = vmatprep.subr.mxu0 0.0
    %481 = vmatpush1.msra.mxu0 0.0
    %482 = vmatprep.subr.mxu0 0.0
    %483 = vmatpush1.msra.mxu0 0.0
    %484 = vmatprep.subr.mxu0 0.0
    %485 = vmatpush1.msra.mxu0 0.0
    %486 = vmatprep.subr.mxu0 0.0
    %487 = vmatpush1.msra.mxu0 0.0
    %488 = vmatprep.subr.mxu0 0.0
    %489 = vmatpush1.msra.mxu0 0.0
    %490 = vmatprep.subr.mxu0 0.0
    %491 = vmatpush1.msra.mxu0 0.0
    %492 = vmatprep.subr.mxu0 0.0
    %493 = vmatpush1.msra.mxu0 0.0
    %494 = vmatprep.subr.mxu0 0.0
    %495 = vmatpush1.msra.mxu0 0.0
    %496 = vmatprep.subr.mxu0 0.0
    %497 = vmatpush1.msra.mxu0 0.0
    %498 = vmatprep.subr.mxu0 0.0
    %499 = vmatpush1.msra.mxu0 0.0
    %500 = vmatprep.subr.mxu0 0.0
    %501 = vmatpush1.msra.mxu0 0.0
    %502 = vmatprep.subr.mxu0 0.0
    %503 = vmatpush1.msra.mxu0 0.0
    %504 = vmatprep.subr.mxu0 0.0
    %505 = vmatpush1.msra.mxu0 0.0
    %506 = vmatprep.subr.mxu0 0.0
    %507 = vmatpush1.msra.mxu0 0.0
    %508 = vmatprep.mubr.f32.mxu0 0.0
    %509 = vmatmul.mubr.f32.gmra.mrb[0].mxu0 %v412
    %v510 = vpop.f32.mrb[0].mxu0
    %v511 = vadd.f32 %v442, %v510
    %v512 = vpop.f32.mrb[0].mxu0
    %513 = vmatprep.mubr.f32.mxu0 0.0
    %514 = vmatmul.mubr.f32.gmra.mrb[0].mxu0 %v413
    %v515 = vpop.f32.mrb[0].mxu0
    %v516 = vadd.f32 %v442, %v515
    %v517 = vpop.f32.mrb[0].mxu0
    %518 = vmatprep.mubr.f32.mxu0 0.0
    %519 = vmatmul.mubr.f32.gmra.mrb[0].mxu0 %v414
    %v520 = vpop.f32.mrb[0].mxu0
    %v521 = vadd.f32 %v442, %v520
    %v522 = vpop.f32.mrb[0].mxu0
    %523 = vmatprep.mubr.f32.mxu0 0.0
    %524 = vmatmul.mubr.f32.gmra.mrb[0].mxu0 %v415
    %v525 = vpop.f32.mrb[0].mxu0
    %v526 = vadd.f32 %v442, %v525
    %v527 = vpop.f32.mrb[0].mxu0
    %528 = vmatprep.mubr.f32.mxu0 0.0
    %529 = vmatmul.mubr.f32.gmra.mrb[0].mxu0 %v416
    %v530 = vpop.f32.mrb[0].mxu0
    %v531 = vadd.f32 %v442, %v530
    %v532 = vpop.f32.mrb[0].mxu0
    %533 = vmatprep.mubr.f32.mxu0 0.0
    %534 = vmatmul.mubr.f32.gmra.mrb[0].mxu0 %v417
    %v535 = vpop.f32.mrb[0].mxu0
    %v536 = vadd.f32 %v442, %v535
    %v537 = vpop.f32.mrb[0].mxu0
    %538 = vmatprep.mubr.f32.mxu0 0.0
    %539 = vmatmul.mubr.f32.gmra.mrb[0].mxu0 %v418
    %v540 = vpop.f32.mrb[0].mxu0
    %v541 = vadd.f32 %v442, %v540
    %v542 = vpop.f32.mrb[0].mxu0
    %543 = vmatprep.mubr.f32.mxu0 0.0
    %544 = vmatmul.mubr.f32.gmra.mrb[0].mxu0 %v419
    %v545 = vpop.f32.mrb[0].mxu0
    %v546 = vadd.f32 %v442, %v545
    %v547 = vpop.f32.mrb[0].mxu0
    %548 = vdwg.mxu0
    %v549 = vmul.f32 %v511, %v170
    %v550 = vmul.f32 %v516, %v171
    %v551 = vmul.f32 %v521, %v172
    %v552 = vmul.f32 %v526, %v173
    %v553 = vmul.f32 %v531, %v174
    %v554 = vmul.f32 %v536, %v175
    %v555 = vmul.f32 %v541, %v176
    %v556 = vmul.f32 %v546, %v177
    %v557 = vadd.f32 %v549, %v550
    %v558 = vadd.f32 %v557, %v551
    %v559 = vadd.f32 %v558, %v552
    %v560 = vadd.f32 %v559, %v553
    %v561 = vadd.f32 %v560, %v554
    %v562 = vadd.f32 %v561, %v555
    %v563 = vadd.f32 %v562, %v556
    %v564 = vrot.slane %v563, 4
    %v565 = vadd.f32 %v563, %v564
    %v566 = vrot.slane %v565, 2
    %v567 = vadd.f32 %v565, %v566
    %v568 = vrot.slane %v567, 1
    %v569 = vadd.f32 %v567, %v568
    %v570 = vmul.f32 %v549, %v511
    %v571 = vmul.f32 %v550, %v516
    %v572 = vmul.f32 %v551, %v521
    %v573 = vmul.f32 %v552, %v526
    %v574 = vmul.f32 %v553, %v531
    %v575 = vmul.f32 %v554, %v536
    %v576 = vmul.f32 %v555, %v541
    %v577 = vmul.f32 %v556, %v546
    %v578 = vadd.f32 %v570, %v571
    %v579 = vadd.f32 %v578, %v572
    %v580 = vadd.f32 %v579, %v573
    %v581 = vadd.f32 %v580, %v574
    %v582 = vadd.f32 %v581, %v575
    %v583 = vadd.f32 %v582, %v576
    %v584 = vadd.f32 %v583, %v577
    %v585 = vrot.slane %v584, 4
    %v586 = vadd.f32 %v584, %v585
    %v587 = vrot.slane %v586, 2
    %v588 = vadd.f32 %v586, %v587
    %v589 = vrot.slane %v588, 1
    %v590 = vadd.f32 %v588, %v589
    %v591 = vmul.f32 %v569, %v193
    %v592 = vmul.f32 %v590, %v193
    %v593 = vmul.f32 %v591, %v591
    %v594 = vsub.f32 %v592, %v593
    %v595 = vmax.f32 %v594, 0.0
    %s596 = scalar_lea.vmem [#allocation14], 1
    %v597 = vld [vmem:[%s596] sm:$0x1]
    %v598 = vadd.f32 %v595, 1e-05
    %v599 = vrsqrt.pop %v598
    %v600 = vmul.f32 %v597, %v599
    %s601 = scalar_lea.vmem [#allocation16], 1
    %v602 = vld [vmem:[%s601] sm:$0x1]
    %v603 = vmul.f32 %v591, %v600
    %v604 = vsub.f32 %v602, %v603
    %v606 = vlaneseq
    %v607 = vshrl.u32 %v606, 7
    %v608 = vsub.s32 0, %v607
    %v609 = vrot.slane %v600, %v608
    %v611 = vmul.f32 %v511, %v609
    %v612 = vmul.f32 %v516, %v609
    %v613 = vmul.f32 %v521, %v609
    %v614 = vmul.f32 %v526, %v609
    %v615 = vmul.f32 %v531, %v609
    %v616 = vmul.f32 %v536, %v609
    %v617 = vmul.f32 %v541, %v609
    %v618 = vmul.f32 %v546, %v609
    %v620 = vlaneseq
    %v621 = vshrl.u32 %v620, 7
    %v622 = vsub.s32 0, %v621
    %v623 = vrot.slane %v604, %v622
    %v625 = vadd.f32 %v611, %v623
    %v626 = vadd.f32 %v612, %v623
    %v627 = vadd.f32 %v613, %v623
    %v628 = vadd.f32 %v614, %v623
    %v629 = vadd.f32 %v615, %v623
    %v630 = vadd.f32 %v616, %v623
    %v631 = vadd.f32 %v617, %v623
    %v632 = vadd.f32 %v618, %v623
    %v633 = vmax.f32 %v625, 0.0
    %v634 = vmax.f32 %v626, 0.0
    %v635 = vmax.f32 %v627, 0.0
    %v636 = vmax.f32 %v628, 0.0
    %v637 = vmax.f32 %v629, 0.0
    %v638 = vmax.f32 %v630, 0.0
    %v639 = vmax.f32 %v631, 0.0
    %v640 = vmax.f32 %v632, 0.0
    %s641 = scalar_lea.vmem [#allocation11], 128
    %v642 = vld [vmem:[%s641] sm:$0xff]
    %v643 = vld [vmem:[%s641 + $0x8] sm:$0xff]
    %v644 = vld [vmem:[%s641 + $0x10] sm:$0xff]
    %v645 = vld [vmem:[%s641 + $0x18] sm:$0xff]
    %v646 = vld [vmem:[%s641 + $0x20] sm:$0xff]
    %v647 = vld [vmem:[%s641 + $0x28] sm:$0xff]
    %v648 = vld [vmem:[%s641 + $0x30] sm:$0xff]
    %v649 = vld [vmem:[%s641 + $0x38] sm:$0xff]
    %v650 = vld [vmem:[%s641 + $0x40] sm:$0xff]
    %v651 = vld [vmem:[%s641 + $0x48] sm:$0xff]
    %v652 = vld [vmem:[%s641 + $0x50] sm:$0xff]
    %v653 = vld [vmem:[%s641 + $0x58] sm:$0xff]
    %v654 = vld [vmem:[%s641 + $0x60] sm:$0xff]
    %v655 = vld [vmem:[%s641 + $0x68] sm:$0xff]
    %v656 = vld [vmem:[%s641 + $0x70] sm:$0xff]
    %v657 = vld [vmem:[%s641 + $0x78] sm:$0xff]
    %s658 = scalar_lea.vmem [#allocation13], 2
    %v659 = vld [vmem:[%s658] sm:$0x1]
    %v661 = vlaneseq
    %v662 = vshrl.u32 %v661, 7
    %v663 = vsub.s32 0, %v662
    %v664 = vrot.slane %v659, %v663
    %666 = vmatprep.subr.mxu0 0.0
    %667 = vmatpush1.msra.mxu0 %v642
    %668 = vmatprep.subr.mxu0 0.0
    %669 = vmatpush1.msra.mxu0 %v643
    %670 = vmatprep.subr.mxu0 0.0
    %671 = vmatpush1.msra.mxu0 %v644
    %672 = vmatprep.subr.mxu0 0.0
    %673 = vmatpush1.msra.mxu0 %v645
    %674 = vmatprep.subr.mxu0 0.0
    %675 = vmatpush1.msra.mxu0 %v646
    %676 = vmatprep.subr.mxu0 0.0
    %677 = vmatpush1.msra.mxu0 %v647
    %678 = vmatprep.subr.mxu0 0.0
    %679 = vmatpush1.msra.mxu0 %v648
    %680 = vmatprep.subr.mxu0 0.0
    %681 = vmatpush1.msra.mxu0 %v649
    %682 = vmatprep.subr.mxu0 0.0
    %683 = vmatpush1.msra.mxu0 %v650
    %684 = vmatprep.subr.mxu0 0.0
    %685 = vmatpush1.msra.mxu0 %v651
    %686 = vmatprep.subr.mxu0 0.0
    %687 = vmatpush1.msra.mxu0 %v652
    %688 = vmatprep.subr.mxu0 0.0
    %689 = vmatpush1.msra.mxu0 %v653
    %690 = vmatprep.subr.mxu0 0.0
    %691 = vmatpush1.msra.mxu0 %v654
    %692 = vmatprep.subr.mxu0 0.0
    %693 = vmatpush1.msra.mxu0 %v655
    %694 = vmatprep.subr.mxu0 0.0
    %695 = vmatpush1.msra.mxu0 %v656
    %696 = vmatprep.subr.mxu0 0.0
    %697 = vmatpush1.msra.mxu0 %v657
    %698 = vmatprep.subr.mxu0 0.0
    %699 = vmatpush1.msra.mxu0 0.0
    %700 = vmatprep.subr.mxu0 0.0
    %701 = vmatpush1.msra.mxu0 0.0
    %702 = vmatprep.subr.mxu0 0.0
    %703 = vmatpush1.msra.mxu0 0.0
    %704 = vmatprep.subr.mxu0 0.0
    %705 = vmatpush1.msra.mxu0 0.0
    %706 = vmatprep.subr.mxu0 0.0
    %707 = vmatpush1.msra.mxu0 0.0
    %708 = vmatprep.subr.mxu0 0.0
    %709 = vmatpush1.msra.mxu0 0.0
    %710 = vmatprep.subr.mxu0 0.0
    %711 = vmatpush1.msra.mxu0 0.0
    %712 = vmatprep.subr.mxu0 0.0
    %713 = vmatpush1.msra.mxu0 0.0
    %714 = vmatprep.subr.mxu0 0.0
    %715 = vmatpush1.msra.mxu0 0.0
    %716 = vmatprep.subr.mxu0 0.0
    %717 = vmatpush1.msra.mxu0 0.0
    %718 = vmatprep.subr.mxu0 0.0
    %719 = vmatpush1.msra.mxu0 0.0
    %720 = vmatprep.subr.mxu0 0.0
    %721 = vmatpush1.msra.mxu0 0.0
    %722 = vmatprep.subr.mxu0 0.0
    %723 = vmatpush1.msra.mxu0 0.0
    %724 = vmatprep.subr.mxu0 0.0
    %725 = vmatpush1.msra.mxu0 0.0
    %726 = vmatprep.subr.mxu0 0.0
    %727 = vmatpush1.msra.mxu0 0.0
    %728 = vmatprep.subr.mxu0 0.0
    %729 = vmatpush1.msra.mxu0 0.0
    %730 = vmatprep.mubr.f32.mxu0 0.0
    %731 = vmatmul.mubr.f32.gmra.mrb[0].mxu0 %v633
    %v732 = vpop.f32.mrb[0].mxu0
    %v733 = vadd.f32 %v664, %v732
    %v734 = vpop.f32.mrb[0].mxu0
    %735 = vmatprep.mubr.f32.mxu0 0.0
    %736 = vmatmul.mubr.f32.gmra.mrb[0].mxu0 %v634
    %v737 = vpop.f32.mrb[0].mxu0
    %v738 = vadd.f32 %v664, %v737
    %v739 = vpop.f32.mrb[0].mxu0
    %740 = vmatprep.mubr.f32.mxu0 0.0
    %741 = vmatmul.mubr.f32.gmra.mrb[0].mxu0 %v635
    %v742 = vpop.f32.mrb[0].mxu0
    %v743 = vadd.f32 %v664, %v742
    %v744 = vpop.f32.mrb[0].mxu0
    %745 = vmatprep.mubr.f32.mxu0 0.0
    %746 = vmatmul.mubr.f32.gmra.mrb[0].mxu0 %v636
    %v747 = vpop.f32.mrb[0].mxu0
    %v748 = vadd.f32 %v664, %v747
    %v749 = vpop.f32.mrb[0].mxu0
    %750 = vmatprep.mubr.f32.mxu0 0.0
    %751 = vmatmul.mubr.f32.gmra.mrb[0].mxu0 %v637
    %v752 = vpop.f32.mrb[0].mxu0
    %v753 = vadd.f32 %v664, %v752
    %v754 = vpop.f32.mrb[0].mxu0
    %755 = vmatprep.mubr.f32.mxu0 0.0
    %756 = vmatmul.mubr.f32.gmra.mrb[0].mxu0 %v638
    %v757 = vpop.f32.mrb[0].mxu0
    %v758 = vadd.f32 %v664, %v757
    %v759 = vpop.f32.mrb[0].mxu0
    %760 = vmatprep.mubr.f32.mxu0 0.0
    %761 = vmatmul.mubr.f32.gmra.mrb[0].mxu0 %v639
    %v762 = vpop.f32.mrb[0].mxu0
    %v763 = vadd.f32 %v664, %v762
    %v764 = vpop.f32.mrb[0].mxu0
    %765 = vmatprep.mubr.f32.mxu0 0.0
    %766 = vmatmul.mubr.f32.gmra.mrb[0].mxu0 %v640
    %v767 = vpop.f32.mrb[0].mxu0
    %v768 = vadd.f32 %v664, %v767
    %v769 = vpop.f32.mrb[0].mxu0
    %770 = vdwg.mxu0
    %v771 = vmul.f32 %v733, %v170
    %v772 = vmul.f32 %v738, %v171
    %v773 = vmul.f32 %v743, %v172
    %v774 = vmul.f32 %v748, %v173
    %v775 = vmul.f32 %v753, %v174
    %v776 = vmul.f32 %v758, %v175
    %v777 = vmul.f32 %v763, %v176
    %v778 = vmul.f32 %v768, %v177
    %v779 = vadd.f32 %v771, %v772
    %v780 = vadd.f32 %v779, %v773
    %v781 = vadd.f32 %v780, %v774
    %v782 = vadd.f32 %v781, %v775
    %v783 = vadd.f32 %v782, %v776
    %v784 = vadd.f32 %v783, %v777
    %v785 = vadd.f32 %v784, %v778
    %v786 = vrot.slane %v785, 4
    %v787 = vadd.f32 %v785, %v786
    %v788 = vrot.slane %v787, 2
    %v789 = vadd.f32 %v787, %v788
    %v790 = vrot.slane %v789, 1
    %v791 = vadd.f32 %v789, %v790
    %v792 = vmul.f32 %v771, %v733
    %v793 = vmul.f32 %v772, %v738
    %v794 = vmul.f32 %v773, %v743
    %v795 = vmul.f32 %v774, %v748
    %v796 = vmul.f32 %v775, %v753
    %v797 = vmul.f32 %v776, %v758
    %v798 = vmul.f32 %v777, %v763
    %v799 = vmul.f32 %v778, %v768
    %v800 = vadd.f32 %v792, %v793
    %v801 = vadd.f32 %v800, %v794
    %v802 = vadd.f32 %v801, %v795
    %v803 = vadd.f32 %v802, %v796
    %v804 = vadd.f32 %v803, %v797
    %v805 = vadd.f32 %v804, %v798
    %v806 = vadd.f32 %v805, %v799
    %v807 = vrot.slane %v806, 4
    %v808 = vadd.f32 %v806, %v807
    %v809 = vrot.slane %v808, 2
    %v810 = vadd.f32 %v808, %v809
    %v811 = vrot.slane %v810, 1
    %v812 = vadd.f32 %v810, %v811
    %v813 = vmul.f32 %v791, %v193
    %v814 = vmul.f32 %v812, %v193
    %v815 = vmul.f32 %v813, %v813
    %v816 = vsub.f32 %v814, %v815
    %v817 = vmax.f32 %v816, 0.0
    %s818 = scalar_lea.vmem [#allocation14], 2
    %v819 = vld [vmem:[%s818] sm:$0x1]
    %v820 = vadd.f32 %v817, 1e-05
    %v821 = vrsqrt.pop %v820
    %v822 = vmul.f32 %v819, %v821
    %s823 = scalar_lea.vmem [#allocation16], 2
    %v824 = vld [vmem:[%s823] sm:$0x1]
    %v825 = vmul.f32 %v813, %v822
    %v826 = vsub.f32 %v824, %v825
    %v828 = vlaneseq
    %v829 = vshrl.u32 %v828, 7
    %v830 = vsub.s32 0, %v829
    %v831 = vrot.slane %v822, %v830
    %v833 = vmul.f32 %v733, %v831
    %v834 = vmul.f32 %v738, %v831
    %v835 = vmul.f32 %v743, %v831
    %v836 = vmul.f32 %v748, %v831
    %v837 = vmul.f32 %v753, %v831
    %v838 = vmul.f32 %v758, %v831
    %v839 = vmul.f32 %v763, %v831
    %v840 = vmul.f32 %v768, %v831
    %v842 = vlaneseq
    %v843 = vshrl.u32 %v842, 7
    %v844 = vsub.s32 0, %v843
    %v845 = vrot.slane %v826, %v844
    %v847 = vadd.f32 %v833, %v845
    %v848 = vadd.f32 %v834, %v845
    %v849 = vadd.f32 %v835, %v845
    %v850 = vadd.f32 %v836, %v845
    %v851 = vadd.f32 %v837, %v845
    %v852 = vadd.f32 %v838, %v845
    %v853 = vadd.f32 %v839, %v845
    %v854 = vadd.f32 %v840, %v845
    %v855 = vmax.f32 %v847, 0.0
    %v856 = vmax.f32 %v848, 0.0
    %v857 = vmax.f32 %v849, 0.0
    %v858 = vmax.f32 %v850, 0.0
    %v859 = vmax.f32 %v851, 0.0
    %v860 = vmax.f32 %v852, 0.0
    %v861 = vmax.f32 %v853, 0.0
    %v862 = vmax.f32 %v854, 0.0
    %s863 = scalar_lea.vmem [#allocation11], 256
    %v864 = vld [vmem:[%s863] sm:$0xff]
    %v865 = vld [vmem:[%s863 + $0x8] sm:$0xff]
    %v866 = vld [vmem:[%s863 + $0x10] sm:$0xff]
    %v867 = vld [vmem:[%s863 + $0x18] sm:$0xff]
    %v868 = vld [vmem:[%s863 + $0x20] sm:$0xff]
    %v869 = vld [vmem:[%s863 + $0x28] sm:$0xff]
    %v870 = vld [vmem:[%s863 + $0x30] sm:$0xff]
    %v871 = vld [vmem:[%s863 + $0x38] sm:$0xff]
    %v872 = vld [vmem:[%s863 + $0x40] sm:$0xff]
    %v873 = vld [vmem:[%s863 + $0x48] sm:$0xff]
    %v874 = vld [vmem:[%s863 + $0x50] sm:$0xff]
    %v875 = vld [vmem:[%s863 + $0x58] sm:$0xff]
    %v876 = vld [vmem:[%s863 + $0x60] sm:$0xff]
    %v877 = vld [vmem:[%s863 + $0x68] sm:$0xff]
    %v878 = vld [vmem:[%s863 + $0x70] sm:$0xff]
    %v879 = vld [vmem:[%s863 + $0x78] sm:$0xff]
    %s880 = scalar_lea.vmem [#allocation13], 3
    %v881 = vld [vmem:[%s880] sm:$0x1]
    %v883 = vlaneseq
    %v884 = vshrl.u32 %v883, 7
    %v885 = vsub.s32 0, %v884
    %v886 = vrot.slane %v881, %v885
    %888 = vmatprep.subr.mxu0 0.0
    %889 = vmatpush1.msra.mxu0 %v864
    %890 = vmatprep.subr.mxu0 0.0
    %891 = vmatpush1.msra.mxu0 %v865
    %892 = vmatprep.subr.mxu0 0.0
    %893 = vmatpush1.msra.mxu0 %v866
    %894 = vmatprep.subr.mxu0 0.0
    %895 = vmatpush1.msra.mxu0 %v867
    %896 = vmatprep.subr.mxu0 0.0
    %897 = vmatpush1.msra.mxu0 %v868
    %898 = vmatprep.subr.mxu0 0.0
    %899 = vmatpush1.msra.mxu0 %v869
    %900 = vmatprep.subr.mxu0 0.0
    %901 = vmatpush1.msra.mxu0 %v870
    %902 = vmatprep.subr.mxu0 0.0
    %903 = vmatpush1.msra.mxu0 %v871
    %904 = vmatprep.subr.mxu0 0.0
    %905 = vmatpush1.msra.mxu0 %v872
    %906 = vmatprep.subr.mxu0 0.0
    %907 = vmatpush1.msra.mxu0 %v873
    %908 = vmatprep.subr.mxu0 0.0
    %909 = vmatpush1.msra.mxu0 %v874
    %910 = vmatprep.subr.mxu0 0.0
    %911 = vmatpush1.msra.mxu0 %v875
    %912 = vmatprep.subr.mxu0 0.0
    %913 = vmatpush1.msra.mxu0 %v876
    %914 = vmatprep.subr.mxu0 0.0
    %915 = vmatpush1.msra.mxu0 %v877
    %916 = vmatprep.subr.mxu0 0.0
    %917 = vmatpush1.msra.mxu0 %v878
    %918 = vmatprep.subr.mxu0 0.0
    %919 = vmatpush1.msra.mxu0 %v879
    %920 = vmatprep.subr.mxu0 0.0
    %921 = vmatpush1.msra.mxu0 0.0
    %922 = vmatprep.subr.mxu0 0.0
    %923 = vmatpush1.msra.mxu0 0.0
    %924 = vmatprep.subr.mxu0 0.0
    %925 = vmatpush1.msra.mxu0 0.0
    %926 = vmatprep.subr.mxu0 0.0
    %927 = vmatpush1.msra.mxu0 0.0
    %928 = vmatprep.subr.mxu0 0.0
    %929 = vmatpush1.msra.mxu0 0.0
    %930 = vmatprep.subr.mxu0 0.0
    %931 = vmatpush1.msra.mxu0 0.0
    %932 = vmatprep.subr.mxu0 0.0
    %933 = vmatpush1.msra.mxu0 0.0
    %934 = vmatprep.subr.mxu0 0.0
    %935 = vmatpush1.msra.mxu0 0.0
    %936 = vmatprep.subr.mxu0 0.0
    %937 = vmatpush1.msra.mxu0 0.0
    %938 = vmatprep.subr.mxu0 0.0
    %939 = vmatpush1.msra.mxu0 0.0
    %940 = vmatprep.subr.mxu0 0.0
    %941 = vmatpush1.msra.mxu0 0.0
    %942 = vmatprep.subr.mxu0 0.0
    %943 = vmatpush1.msra.mxu0 0.0
    %944 = vmatprep.subr.mxu0 0.0
    %945 = vmatpush1.msra.mxu0 0.0
    %946 = vmatprep.subr.mxu0 0.0
    %947 = vmatpush1.msra.mxu0 0.0
    %948 = vmatprep.subr.mxu0 0.0
    %949 = vmatpush1.msra.mxu0 0.0
    %950 = vmatprep.subr.mxu0 0.0
    %951 = vmatpush1.msra.mxu0 0.0
    %952 = vmatprep.mubr.f32.mxu0 0.0
    %953 = vmatmul.mubr.f32.gmra.mrb[0].mxu0 %v855
    %v954 = vpop.f32.mrb[0].mxu0
    %v955 = vadd.f32 %v886, %v954
    %v956 = vpop.f32.mrb[0].mxu0
    %957 = vmatprep.mubr.f32.mxu0 0.0
    %958 = vmatmul.mubr.f32.gmra.mrb[0].mxu0 %v856
    %v959 = vpop.f32.mrb[0].mxu0
    %v960 = vadd.f32 %v886, %v959
    %v961 = vpop.f32.mrb[0].mxu0
    %962 = vmatprep.mubr.f32.mxu0 0.0
    %963 = vmatmul.mubr.f32.gmra.mrb[0].mxu0 %v857
    %v964 = vpop.f32.mrb[0].mxu0
    %v965 = vadd.f32 %v886, %v964
    %v966 = vpop.f32.mrb[0].mxu0
    %967 = vmatprep.mubr.f32.mxu0 0.0
    %968 = vmatmul.mubr.f32.gmra.mrb[0].mxu0 %v858
    %v969 = vpop.f32.mrb[0].mxu0
    %v970 = vadd.f32 %v886, %v969
    %v971 = vpop.f32.mrb[0].mxu0
    %972 = vmatprep.mubr.f32.mxu0 0.0
    %973 = vmatmul.mubr.f32.gmra.mrb[0].mxu0 %v859
    %v974 = vpop.f32.mrb[0].mxu0
    %v975 = vadd.f32 %v886, %v974
    %v976 = vpop.f32.mrb[0].mxu0
    %977 = vmatprep.mubr.f32.mxu0 0.0
    %978 = vmatmul.mubr.f32.gmra.mrb[0].mxu0 %v860
    %v979 = vpop.f32.mrb[0].mxu0
    %v980 = vadd.f32 %v886, %v979
    %v981 = vpop.f32.mrb[0].mxu0
    %982 = vmatprep.mubr.f32.mxu0 0.0
    %983 = vmatmul.mubr.f32.gmra.mrb[0].mxu0 %v861
    %v984 = vpop.f32.mrb[0].mxu0
    %v985 = vadd.f32 %v886, %v984
    %v986 = vpop.f32.mrb[0].mxu0
    %987 = vmatprep.mubr.f32.mxu0 0.0
    %988 = vmatmul.mubr.f32.gmra.mrb[0].mxu0 %v862
    %v989 = vpop.f32.mrb[0].mxu0
    %v990 = vadd.f32 %v886, %v989
    %v991 = vpop.f32.mrb[0].mxu0
    %992 = vdwg.mxu0
    %v993 = vmul.f32 %v955, %v170
    %v994 = vmul.f32 %v960, %v171
    %v995 = vmul.f32 %v965, %v172
    %v996 = vmul.f32 %v970, %v173
    %v997 = vmul.f32 %v975, %v174
    %v998 = vmul.f32 %v980, %v175
    %v999 = vmul.f32 %v985, %v176
    %v1000 = vmul.f32 %v990, %v177
    %v1001 = vadd.f32 %v993, %v994
    %v1002 = vadd.f32 %v1001, %v995
    %v1003 = vadd.f32 %v1002, %v996
    %v1004 = vadd.f32 %v1003, %v997
    %v1005 = vadd.f32 %v1004, %v998
    %v1006 = vadd.f32 %v1005, %v999
    %v1007 = vadd.f32 %v1006, %v1000
    %v1008 = vrot.slane %v1007, 4
    %v1009 = vadd.f32 %v1007, %v1008
    %v1010 = vrot.slane %v1009, 2
    %v1011 = vadd.f32 %v1009, %v1010
    %v1012 = vrot.slane %v1011, 1
    %v1013 = vadd.f32 %v1011, %v1012
    %v1014 = vmul.f32 %v993, %v955
    %v1015 = vmul.f32 %v994, %v960
    %v1016 = vmul.f32 %v995, %v965
    %v1017 = vmul.f32 %v996, %v970
    %v1018 = vmul.f32 %v997, %v975
    %v1019 = vmul.f32 %v998, %v980
    %v1020 = vmul.f32 %v999, %v985
    %v1021 = vmul.f32 %v1000, %v990
    %v1022 = vadd.f32 %v1014, %v1015
    %v1023 = vadd.f32 %v1022, %v1016
    %v1024 = vadd.f32 %v1023, %v1017
    %v1025 = vadd.f32 %v1024, %v1018
    %v1026 = vadd.f32 %v1025, %v1019
    %v1027 = vadd.f32 %v1026, %v1020
    %v1028 = vadd.f32 %v1027, %v1021
    %v1029 = vrot.slane %v1028, 4
    %v1030 = vadd.f32 %v1028, %v1029
    %v1031 = vrot.slane %v1030, 2
    %v1032 = vadd.f32 %v1030, %v1031
    %v1033 = vrot.slane %v1032, 1
    %v1034 = vadd.f32 %v1032, %v1033
    %v1035 = vmul.f32 %v1013, %v193
    %v1036 = vmul.f32 %v1034, %v193
    %v1037 = vmul.f32 %v1035, %v1035
    %v1038 = vsub.f32 %v1036, %v1037
    %v1039 = vmax.f32 %v1038, 0.0
    %s1040 = scalar_lea.vmem [#allocation14], 3
    %v1041 = vld [vmem:[%s1040] sm:$0x1]
    %v1042 = vadd.f32 %v1039, 1e-05
    %v1043 = vrsqrt.pop %v1042
    %v1044 = vmul.f32 %v1041, %v1043
    %s1045 = scalar_lea.vmem [#allocation16], 3
    %v1046 = vld [vmem:[%s1045] sm:$0x1]
    %v1047 = vmul.f32 %v1035, %v1044
    %v1048 = vsub.f32 %v1046, %v1047
    %v1050 = vlaneseq
    %v1051 = vshrl.u32 %v1050, 7
    %v1052 = vsub.s32 0, %v1051
    %v1053 = vrot.slane %v1044, %v1052
    %v1055 = vmul.f32 %v955, %v1053
    %v1056 = vmul.f32 %v960, %v1053
    %v1057 = vmul.f32 %v965, %v1053
    %v1058 = vmul.f32 %v970, %v1053
    %v1059 = vmul.f32 %v975, %v1053
    %v1060 = vmul.f32 %v980, %v1053
    %v1061 = vmul.f32 %v985, %v1053
    %v1062 = vmul.f32 %v990, %v1053
    %v1064 = vlaneseq
    %v1065 = vshrl.u32 %v1064, 7
    %v1066 = vsub.s32 0, %v1065
    %v1067 = vrot.slane %v1048, %v1066
    %v1069 = vadd.f32 %v1055, %v1067
    %v1070 = vadd.f32 %v1056, %v1067
    %v1071 = vadd.f32 %v1057, %v1067
    %v1072 = vadd.f32 %v1058, %v1067
    %v1073 = vadd.f32 %v1059, %v1067
    %v1074 = vadd.f32 %v1060, %v1067
    %v1075 = vadd.f32 %v1061, %v1067
    %v1076 = vadd.f32 %v1062, %v1067
    %v1077 = vmax.f32 %v1069, 0.0
    %v1078 = vmax.f32 %v1070, 0.0
    %v1079 = vmax.f32 %v1071, 0.0
    %v1080 = vmax.f32 %v1072, 0.0
    %v1081 = vmax.f32 %v1073, 0.0
    %v1082 = vmax.f32 %v1074, 0.0
    %v1083 = vmax.f32 %v1075, 0.0
    %v1084 = vmax.f32 %v1076, 0.0
    %v1085 = vld [vmem:[#allocation7] sm:$0xff]
    %v1086 = vld [vmem:[#allocation7 + $0x8] sm:$0xff]
    %v1087 = vld [vmem:[#allocation7 + $0x10] sm:$0xff]
    %v1088 = vld [vmem:[#allocation7 + $0x18] sm:$0xff]
    %v1089 = vld [vmem:[#allocation7 + $0x20] sm:$0xff]
    %v1090 = vld [vmem:[#allocation7 + $0x28] sm:$0xff]
    %v1091 = vld [vmem:[#allocation7 + $0x30] sm:$0xff]
    %v1092 = vld [vmem:[#allocation7 + $0x38] sm:$0xff]
    %v1093 = vmul.f32 %v1077, %v1085
    %v1094 = vmul.f32 %v1078, %v1086
    %v1095 = vmul.f32 %v1079, %v1087
    %v1096 = vmul.f32 %v1080, %v1088
    %v1097 = vmul.f32 %v1081, %v1089
    %v1098 = vmul.f32 %v1082, %v1090
    %v1099 = vmul.f32 %v1083, %v1091
    %v1100 = vmul.f32 %v1084, %v1092
    %v1101 = vld [vmem:[#allocation8] sm:$0x1]
    %v1102 = vlaneseq
    %v1103 = vshrl.u32 %v1102, 7
    %v1104 = vlaneseq
    %v1105 = vshrl.u32 %v1104, 7
    %v1106 = vsub.s32 0, %v1105
    %v1107 = vrot.slane %v1101, %v1106
    %vm1108 = vcmp.eq.s32.totalorder %v1103, %v1107
    %v1109 = vsel %vm1108, 1, 0
    %v1110 = vcvt.s32.f32 %v1109
    %vm1111 = vcmask 523264
    %v1113 = vsel %vm1111, %v1110, 0
    %1115 = vmatprep.subr.mxu0 0.0
    %1116 = vmatpush1.msra.mxu0 %v1093
    %1117 = vmatprep.subr.mxu0 0.0
    %1118 = vmatpush1.msra.mxu0 %v1094
    %1119 = vmatprep.subr.mxu0 0.0
    %1120 = vmatpush1.msra.mxu0 %v1095
    %1121 = vmatprep.subr.mxu0 0.0
    %1122 = vmatpush1.msra.mxu0 %v1096
    %1123 = vmatprep.subr.mxu0 0.0
    %1124 = vmatpush1.msra.mxu0 %v1097
    %1125 = vmatprep.subr.mxu0 0.0
    %1126 = vmatpush1.msra.mxu0 %v1098
    %1127 = vmatprep.subr.mxu0 0.0
    %1128 = vmatpush1.msra.mxu0 %v1099
    %1129 = vmatprep.subr.mxu0 0.0
    %1130 = vmatpush1.msra.mxu0 %v1100
    %1131 = vmatprep.subr.mxu0 0.0
    %1132 = vmatpush1.msra.mxu0 0.0
    %1133 = vmatprep.subr.mxu0 0.0
    %1134 = vmatpush1.msra.mxu0 0.0
    %1135 = vmatprep.subr.mxu0 0.0
    %1136 = vmatpush1.msra.mxu0 0.0
    %1137 = vmatprep.subr.mxu0 0.0
    %1138 = vmatpush1.msra.mxu0 0.0
    %1139 = vmatprep.subr.mxu0 0.0
    %1140 = vmatpush1.msra.mxu0 0.0
    %1141 = vmatprep.subr.mxu0 0.0
    %1142 = vmatpush1.msra.mxu0 0.0
    %1143 = vmatprep.subr.mxu0 0.0
    %1144 = vmatpush1.msra.mxu0 0.0
    %1145 = vmatprep.subr.mxu0 0.0
    %1146 = vmatpush1.msra.mxu0 0.0
    %1147 = vmatprep.subr.mxu0 0.0
    %1148 = vmatpush1.msra.mxu0 0.0
    %1149 = vmatprep.subr.mxu0 0.0
    %1150 = vmatpush1.msra.mxu0 0.0
    %1151 = vmatprep.subr.mxu0 0.0
    %1152 = vmatpush1.msra.mxu0 0.0
    %1153 = vmatprep.subr.mxu0 0.0
    %1154 = vmatpush1.msra.mxu0 0.0
    %1155 = vmatprep.subr.mxu0 0.0
    %1156 = vmatpush1.msra.mxu0 0.0
    %1157 = vmatprep.subr.mxu0 0.0
    %1158 = vmatpush1.msra.mxu0 0.0
    %1159 = vmatprep.subr.mxu0 0.0
    %1160 = vmatpush1.msra.mxu0 0.0
    %1161 = vmatprep.subr.mxu0 0.0
    %1162 = vmatpush1.msra.mxu0 0.0
    %1163 = vmatprep.subr.mxu0 0.0
    %1164 = vmatpush1.msra.mxu0 0.0
    %1165 = vmatprep.subr.mxu0 0.0
    %1166 = vmatpush1.msra.mxu0 0.0
    %1167 = vmatprep.subr.mxu0 0.0
    %1168 = vmatpush1.msra.mxu0 0.0
    %1169 = vmatprep.subr.mxu0 0.0
    %1170 = vmatpush1.msra.mxu0 0.0
    %1171 = vmatprep.subr.mxu0 0.0
    %1172 = vmatpush1.msra.mxu0 0.0
    %1173 = vmatprep.subr.mxu0 0.0
    %1174 = vmatpush1.msra.mxu0 0.0
    %1175 = vmatprep.subr.mxu0 0.0
    %1176 = vmatpush1.msra.mxu0 0.0
    %1177 = vmatprep.subr.mxu0 0.0
    %1178 = vmatpush1.msra.mxu0 0.0
    %1179 = vmatprep.mubr.f32.mxu0 0.0
    %1180 = vmatmul.mubr.f32.gmra.mrb[0].mxu0 %v1113
    %v1181 = vpop.f32.mrb[0].mxu0
    %v1182 = vadd.f32 0.0, %v1181
    %v1183 = vpop.f32.mrb[0].mxu0
    %1184 = vdwg.mxu0
    %v1185 = vld [vmem:[#allocation17] sm:$0xff]
    %v1186 = vld [vmem:[#allocation17 + $0x8] sm:$0xff]
    %v1187 = vld [vmem:[#allocation17 + $0x10] sm:$0xff]
    %v1188 = vld [vmem:[#allocation17 + $0x18] sm:$0xff]
    %v1189 = vld [vmem:[#allocation17 + $0x20] sm:$0xff]
    %v1190 = vld [vmem:[#allocation17 + $0x28] sm:$0xff]
    %v1191 = vld [vmem:[#allocation17 + $0x30] sm:$0xff]
    %v1192 = vld [vmem:[#allocation17 + $0x38] sm:$0xff]
    %v1193 = vld [vmem:[#allocation17 + $0x40] sm:$0xff]
    %v1194 = vld [vmem:[#allocation17 + $0x48] sm:$0xff]
    %v1195 = vld [vmem:[#allocation17 + $0x50] sm:$0xff]
    %v1196 = vld [vmem:[#allocation17 + $0x58] sm:$0xff]
    %v1197 = vld [vmem:[#allocation17 + $0x60] sm:$0xff]
    %v1198 = vld [vmem:[#allocation17 + $0x68] sm:$0xff]
    %v1199 = vld [vmem:[#allocation17 + $0x70] sm:$0xff]
    %v1200 = vld [vmem:[#allocation17 + $0x78] sm:$0xff]
    %1201 = vmatprep.subr.mxu0 0.0
    %1202 = vmatpush1.msra.mxu0 %v1185
    %1203 = vmatprep.subr.mxu0 0.0
    %1204 = vmatpush1.msra.mxu0 %v1186
    %1205 = vmatprep.subr.mxu0 0.0
    %1206 = vmatpush1.msra.mxu0 %v1187
    %1207 = vmatprep.subr.mxu0 0.0
    %1208 = vmatpush1.msra.mxu0 %v1188
    %1209 = vmatprep.subr.mxu0 0.0
    %1210 = vmatpush1.msra.mxu0 %v1189
    %1211 = vmatprep.subr.mxu0 0.0
    %1212 = vmatpush1.msra.mxu0 %v1190
    %1213 = vmatprep.subr.mxu0 0.0
    %1214 = vmatpush1.msra.mxu0 %v1191
    %1215 = vmatprep.subr.mxu0 0.0
    %1216 = vmatpush1.msra.mxu0 %v1192
    %1217 = vmatprep.subr.mxu0 0.0
    %1218 = vmatpush1.msra.mxu0 %v1193
    %1219 = vmatprep.subr.mxu0 0.0
    %1220 = vmatpush1.msra.mxu0 %v1194
    %1221 = vmatprep.subr.mxu0 0.0
    %1222 = vmatpush1.msra.mxu0 %v1195
    %1223 = vmatprep.subr.mxu0 0.0
    %1224 = vmatpush1.msra.mxu0 %v1196
    %1225 = vmatprep.subr.mxu0 0.0
    %1226 = vmatpush1.msra.mxu0 %v1197
    %1227 = vmatprep.subr.mxu0 0.0
    %1228 = vmatpush1.msra.mxu0 %v1198
    %1229 = vmatprep.subr.mxu0 0.0
    %1230 = vmatpush1.msra.mxu0 %v1199
    %1231 = vmatprep.subr.mxu0 0.0
    %1232 = vmatpush1.msra.mxu0 %v1200
    %1233 = vmatprep.subr.mxu0 0.0
    %1234 = vmatpush1.msra.mxu0 0.0
    %1235 = vmatprep.subr.mxu0 0.0
    %1236 = vmatpush1.msra.mxu0 0.0
    %1237 = vmatprep.subr.mxu0 0.0
    %1238 = vmatpush1.msra.mxu0 0.0
    %1239 = vmatprep.subr.mxu0 0.0
    %1240 = vmatpush1.msra.mxu0 0.0
    %1241 = vmatprep.subr.mxu0 0.0
    %1242 = vmatpush1.msra.mxu0 0.0
    %1243 = vmatprep.subr.mxu0 0.0
    %1244 = vmatpush1.msra.mxu0 0.0
    %1245 = vmatprep.subr.mxu0 0.0
    %1246 = vmatpush1.msra.mxu0 0.0
    %1247 = vmatprep.subr.mxu0 0.0
    %1248 = vmatpush1.msra.mxu0 0.0
    %1249 = vmatprep.subr.mxu0 0.0
    %1250 = vmatpush1.msra.mxu0 0.0
    %1251 = vmatprep.subr.mxu0 0.0
    %1252 = vmatpush1.msra.mxu0 0.0
    %1253 = vmatprep.subr.mxu0 0.0
    %1254 = vmatpush1.msra.mxu0 0.0
    %1255 = vmatprep.subr.mxu0 0.0
    %1256 = vmatpush1.msra.mxu0 0.0
    %1257 = vmatprep.subr.mxu0 0.0
    %1258 = vmatpush1.msra.mxu0 0.0
    %1259 = vmatprep.subr.mxu0 0.0
    %1260 = vmatpush1.msra.mxu0 0.0
    %1261 = vmatprep.subr.mxu0 0.0
    %1262 = vmatpush1.msra.mxu0 0.0
    %1263 = vmatprep.subr.mxu0 0.0
    %1264 = vmatpush1.msra.mxu0 0.0
    %1265 = vmatprep.mubr.f32.mxu0 0.0
    %1266 = vmatmul.mubr.f32.gmra.mrb[0].mxu0 %v1182
    %v1267 = vpop.f32.mrb[0].mxu0
    %v1268 = vadd.f32 0.0, %v1267
    %v1269 = vpop.f32.mrb[0].mxu0
    %1270 = vdwg.mxu0
    %vm1271 = vcmask 261120
    %1272 = vst.msk [vmem:[#allocation19] sm:$0xff] %vm1271, %v1268
    // Predicated region
    $region82: #{tpu_custom_call.1} parent=1 // pred_check
      _
    $region83: #{tpu_custom_call.1} parent=1 // pred_check_branch
      %1274 = sbr.rel (0) target = $region85
    $region84: #{tpu_custom_call.1} parent=1 // pred_region
      %s1276 = ssub.s32 128, 128
      %1277 = vsyncadd [#allocation4], %s1276
      %s1279 = sshll.u32 [#allocation19], 4
      %s1280 = int_to_ptr.vmem [resolvable:$true] %s1279
      %1282 = dma.vmem_to_hbm [thread:$0]  %s1280, 128, %s10, [#allocation4]
    $region85: #{tpu_custom_call.1} parent=1 // pred_fallthru
      _
    // Predicated region
    $region86: #{tpu_custom_call.1} parent=1 // pred_check
      _
    $region87: #{tpu_custom_call.1} parent=1 // pred_check_branch
      %1284 = sbr.rel (0) target = $region89
    $region88: #{tpu_custom_call.1} parent=1 // pred_region
      %1285 = dma.done [#allocation4], 128
    $region89: #{tpu_custom_call.1} parent=1 // pred_fallthru
      _
    %1286 = vsyncpa [#allocation3], 1
    %1287 = vsyncpa [#allocation6], 1
    %1288 = vsyncpa [#allocation9], 1
    %1289 = vsyncpa [#allocation12], 1
    %1290 = vsyncpa [#allocation15], 1
    %1291 = vsyncpa [#allocation18], 1
    %1292 = vsyncpa [#allocation4], 1

</llo_original>
